<compile_context>
chip_gen: v5e
topology: v5e:2x2
jax: 0.10.0
libtpu: 0.0.40
codegen_flags: <defaults>
</compile_context>

<pallas_src>
import math
from functools import partial

import jax
import jax.numpy as jnp
from jax import lax
from jax.experimental import pallas as pl
from jax.experimental.pallas import tpu as pltpu


def _round_up(v: int, m: int) -> int:
    return (v + m - 1) // m * m


def _quadtree_flash_kernel(q_ref, k_ref, v_ref, xres_ref, o_ref,
                           m_sc, l_sc, acc_sc, *, kv_tile, n_valid, needs_mask):
    ki = pl.program_id(2)
    nk = pl.num_programs(2)

    # --- init per-q-tile online-softmax state on the first KV step ---------
    @pl.when(ki == 0)
    def _():
        m_sc[...] = jnp.full(m_sc.shape, -jnp.inf, dtype=jnp.float32)
        l_sc[...] = jnp.zeros(l_sc.shape, dtype=jnp.float32)
        acc_sc[...] = jnp.zeros(acc_sc.shape, dtype=jnp.float32)

    # --- streamed KV tile: scores + online softmax + PV accumulation -------
    q = q_ref[0]                                   # (TQ, Cq) f32
    k = k_ref[0].astype(jnp.float32)               # (Cq, TK) bf16 -> f32
    v = v_ref[0].astype(jnp.float32)               # (C,  TK) bf16 -> f32

    s = jnp.dot(q, k, preferred_element_type=jnp.float32)        # (TQ, TK)
    if needs_mask:                                 # static (only when N was padded)
        col = ki * kv_tile + lax.broadcasted_iota(jnp.int32, s.shape, 1)
        s = jnp.where(col < n_valid, s, jnp.float32(-1e30))

    m_prev = m_sc[...]                                            # (TQ, 1)
    m_new = jnp.maximum(m_prev, jnp.max(s, axis=-1, keepdims=True))
    alpha = jnp.exp(m_prev - m_new)
    p = jnp.exp(s - m_new)                                        # (TQ, TK) f32
    l_sc[...] = alpha * l_sc[...] + jnp.sum(p, axis=-1, keepdims=True)
    # contract the TK dims of p and v (trans_b form, no explicit transpose)
    pv = lax.dot_general(p, v, (((1,), (1,)), ((), ())),
                         preferred_element_type=jnp.float32)      # (TQ, C)
    acc_sc[...] = alpha * acc_sc[...] + pv
    m_sc[...] = m_new

    # --- finalize: normalize, add residual, lane-dense (C, TQ) store -------
    @pl.when(ki == nk - 1)
    def _():
        out_tc = acc_sc[...] / l_sc[...]                          # exact divide
        o_ref[0] = (out_tc.T + xres_ref[0]).astype(o_ref.dtype)


def quadtree_attention_pallas(x_nchw, wq, wk, wv, gamma, *, tq=256, tk=256):
    """x_nchw: (B, C, H, W) f32.  wq/wk: (C, C//8), wv: (C, C) stored as matmul
    matrices (== torch conv weight[:, :, 0, 0].T).  gamma: (1,) f32."""
    B, C, H, W = x_nchw.shape
    Cq = wq.shape[1]
    N = H * W
    x_flat = x_nchw.reshape(B, C, N)               # NCHW-native, no transposes

    # 1x1-conv projections == channel matmuls: done ONCE here (XLA) instead of
    # per grid step inside the kernel.  gamma folded into Wv -> y = out_v + x.
    q = jnp.einsum("bcn,cd->bnd", x_flat, wq)                 # (B, N, Cq) f32
    k = jnp.einsum("bcn,cd->bdn", x_flat, wk)                 # (B, Cq, N) f32
    v = jnp.einsum("bcn,cd->bdn", x_flat, wv * gamma[0])      # (B, C,  N) f32

    # Lane-aligned tiles, clamped to the (128-padded) sequence length.
    n128 = _round_up(N, 128)
    tq = min(tq, n128)
    tk = min(tk, n128)
    n_pad = _round_up(N, math.lcm(tq, tk))
    pad = n_pad - N
    if pad:
        q = jnp.pad(q, ((0, 0), (0, pad), (0, 0)))
        k = jnp.pad(k, ((0, 0), (0, 0), (0, pad)))
        v = jnp.pad(v, ((0, 0), (0, 0), (0, pad)))
        x_res = jnp.pad(x_flat, ((0, 0), (0, 0), (0, pad)))
    else:
        x_res = x_flat

    # K/V are re-streamed once per query tile -> ship them as bf16.
    k = k.astype(jnp.bfloat16)
    v = v.astype(jnp.bfloat16)

    grid = (B, n_pad // tq, n_pad // tk)
    kernel = partial(_quadtree_flash_kernel,
                     kv_tile=tk, n_valid=N, needs_mask=pad > 0)

    out = pl.pallas_call(
        kernel,
        out_shape=jax.ShapeDtypeStruct((B, C, n_pad), x_nchw.dtype),
        grid_spec=pltpu.PrefetchScalarGridSpec(
            num_scalar_prefetch=0,
            grid=grid,
            in_specs=[
                pl.BlockSpec((1, tq, Cq), lambda b, qi, ki: (b, qi, 0)),  # Q tile (f32)
                pl.BlockSpec((1, Cq, tk), lambda b, qi, ki: (b, 0, ki)),  # K tile (bf16)
                pl.BlockSpec((1, C, tk), lambda b, qi, ki: (b, 0, ki)),   # V tile (bf16)
                pl.BlockSpec((1, C, tq), lambda b, qi, ki: (b, 0, qi)),   # residual x tile
            ],
            out_specs=pl.BlockSpec((1, C, tq), lambda b, qi, ki: (b, 0, qi)),
            scratch_shapes=[
                pltpu.VMEM((tq, 1), jnp.float32),   # running max
                pltpu.VMEM((tq, 1), jnp.float32),   # running denominator
                pltpu.VMEM((tq, C), jnp.float32),   # output accumulator
            ],
        ),
        compiler_params=pltpu.CompilerParams(
            dimension_semantics=("parallel", "parallel", "arbitrary"),
        ),
    )(q, k, v, x_res)

    if pad:
        out = out[:, :, :N]
    return out.reshape(B, C, H, W)


def quadtree_attention_ref(x_nchw, wq, wk, wv, gamma):
    """Pure-JAX reference mirroring the PyTorch forward exactly (f32, unfused)."""
    B, C, H, W = x_nchw.shape
    N = H * W
    x_flat = x_nchw.reshape(B, C, N)                                  # (B, C, N)
    q = jnp.einsum("bcn,cd->bnd", x_flat, wq)                         # (B, N, Cq)
    k = jnp.einsum("bcn,cd->bdn", x_flat, wk)                         # (B, Cq, N)
    v = jnp.einsum("bcn,cd->bdn", x_flat, wv)                         # (B, C, N)
    attn = jax.nn.softmax(jnp.einsum("bnd,bdm->bnm", q, k), axis=-1)  # (B, N, N)
    out = jnp.einsum("bcn,bmn->bcm", v, attn)                         # (B, C, N)
    return (gamma[0] * out + x_flat).reshape(B, C, H, W)


if __name__ == "__main__":
    key = jax.random.PRNGKey(0)
    B, C, H, W = 2, 32, 16, 16          # N = 256
    Cq = C // 8

    kx, kq, kk, kv, kx2 = jax.random.split(key, 5)
    x = jax.random.normal(kx, (B, C, H, W), dtype=jnp.float32)

    # 1x1 conv weights as (C_in, C_out) matmul matrices (== torch weight[:, :, 0, 0].T)
    wq = jax.random.normal(kq, (C, Cq), dtype=jnp.float32) * 0.1
    wk = jax.random.normal(kk, (C, Cq), dtype=jnp.float32) * 0.1
    wv = jax.random.normal(kv, (C, C), dtype=jnp.float32) * 0.2
    # nn.Parameter(torch.zeros(1)) in the module; use a nonzero value here so
    # the attention path actually contributes to the tested output.
    gamma = jnp.array([1.0], dtype=jnp.float32)

    def check(y, y_ref, tag):
        assert y.shape == y_ref.shape, (tag, y.shape, y_ref.shape)
        err = jnp.max(jnp.abs(y - y_ref))
        # bf16-streamed K/V -> relaxed tolerance vs the f32 reference
        assert jnp.allclose(y, y_ref, atol=2e-2, rtol=2e-2), f"{tag}: max abs err {err}"

    y_ref = quadtree_attention_ref(x, wq, wk, wv, gamma)

    # 1) default tiles (tq = tk = 256): one KV tile per batch
    y = quadtree_attention_pallas(x, wq, wk, wv, gamma)
    jax.block_until_ready(y)
    check(y, y_ref, "default-tiles")

    # 2) small tiles: exercises the multi-tile online-softmax accumulation
    y2 = quadtree_attention_pallas(x, wq, wk, wv, gamma, tq=128, tk=128)
    jax.block_until_ready(y2)
    check(y2, y_ref, "flash-tiles")

    # 3) non-128-multiple spatial size: exercises N padding + KV column masking
    xp = jax.random.normal(kx2, (B, C, 15, 15), dtype=jnp.float32)
    y3 = quadtree_attention_pallas(xp, wq, wk, wv, gamma)
    jax.block_until_ready(y3)
    check(y3, quadtree_attention_ref(xp, wq, wk, wv, gamma), "padded-N")

    print("KERNEL_OK")
</pallas_src>

<mosaic_0001>
module attributes {stable_mosaic.version = 11 : i64} {
  func.func @_quadtree_flash_kernel(%arg0: i32, %arg1: i32, %arg2: i32, %arg3: memref<1x256x4xf32, #tpu.memory_space<vmem>>, %arg4: memref<1x4x256xbf16, #tpu.memory_space<vmem>>, %arg5: memref<1x32x256xbf16, #tpu.memory_space<vmem>>, %arg6: memref<1x32x256xf32, #tpu.memory_space<vmem>>, %arg7: memref<1x32x256xf32, #tpu.memory_space<vmem>>, %arg8: memref<256x1xf32, #tpu.memory_space<vmem>>, %arg9: memref<256x1xf32, #tpu.memory_space<vmem>>, %arg10: memref<256x32xf32, #tpu.memory_space<vmem>>) attributes {dimension_semantics = [#tpu.dimension_semantics<parallel>, #tpu.dimension_semantics<parallel>, #tpu.dimension_semantics<arbitrary>], iteration_bounds = array<i64: 2, 1, 1>, scalar_prefetch = 0 : i64, scratch_operands = 3 : i64, tpu.core_type = #tpu.core_type<tc>, window_params = [{transform_indices = @transform_0, window_bounds = array<i64: 1, 256, 4>}, {transform_indices = @transform_1, window_bounds = array<i64: 1, 4, 256>}, {transform_indices = @transform_2, window_bounds = array<i64: 1, 32, 256>}, {transform_indices = @transform_3, window_bounds = array<i64: 1, 32, 256>}, {transform_indices = @transform_4, window_bounds = array<i64: 1, 32, 256>}]} {
    %c0_i32 = arith.constant 0 : i32
    %0 = arith.cmpi eq, %arg2, %c0_i32 : i32
    %1 = arith.extui %0 : i1 to i32
    %c0_i32_0 = arith.constant 0 : i32
    %2 = arith.cmpi ne, %1, %c0_i32_0 : i32
    scf.if %2 {
      %cst_26 = arith.constant 0xFF800000 : f32
      %37 = vector.broadcast %cst_26 : f32 to vector<256x1xf32>
      %c0_27 = arith.constant 0 : index
      %c0_28 = arith.constant 0 : index
      %38 = vector.load %arg8[%c0_27, %c0_28] : memref<256x1xf32, #tpu.memory_space<vmem>>, vector<256x1xf32>
      tpu.vector_store %arg8[%c0_27, %c0_28], %37 {strides = array<i32>} : memref<256x1xf32, #tpu.memory_space<vmem>>, vector<256x1xf32>,
      %cst_29 = arith.constant 0.000000e+00 : f32
      %39 = vector.broadcast %cst_29 : f32 to vector<256x1xf32>
      %c0_30 = arith.constant 0 : index
      %c0_31 = arith.constant 0 : index
      %40 = vector.load %arg9[%c0_30, %c0_31] : memref<256x1xf32, #tpu.memory_space<vmem>>, vector<256x1xf32>
      tpu.vector_store %arg9[%c0_30, %c0_31], %39 {strides = array<i32>} : memref<256x1xf32, #tpu.memory_space<vmem>>, vector<256x1xf32>,
      %cst_32 = arith.constant 0.000000e+00 : f32
      %41 = vector.broadcast %cst_32 : f32 to vector<256x32xf32>
      %c0_33 = arith.constant 0 : index
      %c0_34 = arith.constant 0 : index
      %42 = vector.load %arg10[%c0_33, %c0_34] : memref<256x32xf32, #tpu.memory_space<vmem>>, vector<256x32xf32>
      tpu.vector_store %arg10[%c0_33, %c0_34], %41 {strides = array<i32>} : memref<256x32xf32, #tpu.memory_space<vmem>>, vector<256x32xf32>,
    } else {
    }
    %c0 = arith.constant 0 : index
    %c0_1 = arith.constant 0 : index
    %c0_2 = arith.constant 0 : index
    %3 = vector.load %arg3[%c0, %c0_1, %c0_2] : memref<1x256x4xf32, #tpu.memory_space<vmem>>, vector<1x256x4xf32>
    %4 = vector.shape_cast %3 : vector<1x256x4xf32> to vector<256x4xf32>
    %c0_3 = arith.constant 0 : index
    %c0_4 = arith.constant 0 : index
    %c0_5 = arith.constant 0 : index
    %5 = vector.load %arg4[%c0_3, %c0_4, %c0_5] : memref<1x4x256xbf16, #tpu.memory_space<vmem>>, vector<1x4x256xbf16>
    %6 = vector.shape_cast %5 : vector<1x4x256xbf16> to vector<4x256xbf16>
    %7 = arith.extf %6 : vector<4x256xbf16> to vector<4x256xf32>
    %c0_6 = arith.constant 0 : index
    %c0_7 = arith.constant 0 : index
    %c0_8 = arith.constant 0 : index
    %8 = vector.load %arg5[%c0_6, %c0_7, %c0_8] : memref<1x32x256xbf16, #tpu.memory_space<vmem>>, vector<1x32x256xbf16>
    %9 = vector.shape_cast %8 : vector<1x32x256xbf16> to vector<32x256xbf16>
    %10 = arith.extf %9 : vector<32x256xbf16> to vector<32x256xf32>
    %cst = arith.constant dense<0.000000e+00> : vector<256x256xf32>
    %11 = tpu.matmul %4, %7, %cst {dimension_numbers = #tpu.dot_dimension_numbers<[1], [0], [0], [1], [0, 0, 1, 1], [], []>} : vector<256x4xf32>, vector<4x256xf32>, vector<256x256xf32> -> vector<256x256xf32>
    %c0_9 = arith.constant 0 : index
    %c0_10 = arith.constant 0 : index
    %12 = vector.load %arg8[%c0_9, %c0_10] : memref<256x1xf32, #tpu.memory_space<vmem>>, vector<256x1xf32>
    %cst_11 = arith.constant dense<0xFF800000> : vector<256xf32>
    %13 = vector.multi_reduction <maximumf>, %11, %cst_11 [1] : vector<256x256xf32> to vector<256xf32>
    %14 = vector.shape_cast %13 : vector<256xf32> to vector<256x1xf32>
    %15 = arith.maximumf %12, %14 : vector<256x1xf32>
    %16 = arith.subf %12, %15 : vector<256x1xf32>
    %17 = math.exp %16 : vector<256x1xf32>
    %18 = vector.broadcast %15 : vector<256x1xf32> to vector<256x256xf32>
    %19 = arith.subf %11, %18 : vector<256x256xf32>
    %20 = math.exp %19 : vector<256x256xf32>
    %c0_12 = arith.constant 0 : index
    %c0_13 = arith.constant 0 : index
    %21 = vector.load %arg9[%c0_12, %c0_13] : memref<256x1xf32, #tpu.memory_space<vmem>>, vector<256x1xf32>
    %22 = arith.mulf %17, %21 : vector<256x1xf32>
    %cst_14 = arith.constant dense<0.000000e+00> : vector<256xf32>
    %23 = vector.multi_reduction <add>, %20, %cst_14 [1] : vector<256x256xf32> to vector<256xf32>
    %24 = vector.shape_cast %23 : vector<256xf32> to vector<256x1xf32>
    %25 = arith.addf %22, %24 : vector<256x1xf32>
    %c0_15 = arith.constant 0 : index
    %c0_16 = arith.constant 0 : index
    %26 = vector.load %arg9[%c0_15, %c0_16] : memref<256x1xf32, #tpu.memory_space<vmem>>, vector<256x1xf32>
    tpu.vector_store %arg9[%c0_15, %c0_16], %25 {strides = array<i32>} : memref<256x1xf32, #tpu.memory_space<vmem>>, vector<256x1xf32>,
    %cst_17 = arith.constant dense<0.000000e+00> : vector<256x32xf32>
    %27 = tpu.matmul %20, %10, %cst_17 {dimension_numbers = #tpu.dot_dimension_numbers<[1], [1], [0], [0], [0, 0, 1, 0], [], []>} : vector<256x256xf32>, vector<32x256xf32>, vector<256x32xf32> -> vector<256x32xf32>
    %c0_18 = arith.constant 0 : index
    %c0_19 = arith.constant 0 : index
    %28 = vector.load %arg10[%c0_18, %c0_19] : memref<256x32xf32, #tpu.memory_space<vmem>>, vector<256x32xf32>
    %29 = vector.broadcast %17 : vector<256x1xf32> to vector<256x32xf32>
    %30 = arith.mulf %29, %28 : vector<256x32xf32>
    %31 = arith.addf %30, %27 : vector<256x32xf32>
    %c0_20 = arith.constant 0 : index
    %c0_21 = arith.constant 0 : index
    %32 = vector.load %arg10[%c0_20, %c0_21] : memref<256x32xf32, #tpu.memory_space<vmem>>, vector<256x32xf32>
    tpu.vector_store %arg10[%c0_20, %c0_21], %31 {strides = array<i32>} : memref<256x32xf32, #tpu.memory_space<vmem>>, vector<256x32xf32>,
    %c0_22 = arith.constant 0 : index
    %c0_23 = arith.constant 0 : index
    %33 = vector.load %arg8[%c0_22, %c0_23] : memref<256x1xf32, #tpu.memory_space<vmem>>, vector<256x1xf32>
    tpu.vector_store %arg8[%c0_22, %c0_23], %15 {strides = array<i32>} : memref<256x1xf32, #tpu.memory_space<vmem>>, vector<256x1xf32>,
    %c0_i32_24 = arith.constant 0 : i32
    %34 = arith.cmpi eq, %arg2, %c0_i32_24 : i32
    %35 = arith.extui %34 : i1 to i32
    %c0_i32_25 = arith.constant 0 : i32
    %36 = arith.cmpi ne, %35, %c0_i32_25 : i32
    scf.if %36 {
      %c0_26 = arith.constant 0 : index
      %c0_27 = arith.constant 0 : index
      %37 = vector.load %arg10[%c0_26, %c0_27] : memref<256x32xf32, #tpu.memory_space<vmem>>, vector<256x32xf32>
      %c0_28 = arith.constant 0 : index
      %c0_29 = arith.constant 0 : index
      %38 = vector.load %arg9[%c0_28, %c0_29] : memref<256x1xf32, #tpu.memory_space<vmem>>, vector<256x1xf32>
      %39 = vector.broadcast %38 : vector<256x1xf32> to vector<256x32xf32>
      %40 = arith.divf %37, %39 : vector<256x32xf32>
      %41 = tpu.transpose %40, [1, 0] : vector<256x32xf32> -> vector<32x256xf32>
      %c0_30 = arith.constant 0 : index
      %c0_31 = arith.constant 0 : index
      %c0_32 = arith.constant 0 : index
      %42 = vector.load %arg6[%c0_30, %c0_31, %c0_32] : memref<1x32x256xf32, #tpu.memory_space<vmem>>, vector<1x32x256xf32>
      %43 = vector.shape_cast %42 : vector<1x32x256xf32> to vector<32x256xf32>
      %44 = arith.addf %41, %43 : vector<32x256xf32>
      %c0_33 = arith.constant 0 : index
      %c0_34 = arith.constant 0 : index
      %c0_35 = arith.constant 0 : index
      %45 = vector.load %arg7[%c0_33, %c0_34, %c0_35] : memref<1x32x256xf32, #tpu.memory_space<vmem>>, vector<1x32x256xf32>
      %46 = vector.shape_cast %45 : vector<1x32x256xf32> to vector<32x256xf32>
      %47 = vector.shape_cast %44 : vector<32x256xf32> to vector<1x32x256xf32>
      tpu.vector_store %arg7[%c0_33, %c0_34, %c0_35], %47 {strides = array<i32>} : memref<1x32x256xf32, #tpu.memory_space<vmem>>, vector<1x32x256xf32>,
    } else {
    }
    return
  }
  func.func @transform_0(%arg0: i32, %arg1: i32, %arg2: i32) -> (i32, i32, i32) {
    %c0_i32 = arith.constant 0 : i32
    %c0_i32_0 = arith.constant 0 : i32
    return %arg0, %arg1, %c0_i32 : i32, i32, i32
  }
  func.func @transform_1(%arg0: i32, %arg1: i32, %arg2: i32) -> (i32, i32, i32) {
    %c0_i32 = arith.constant 0 : i32
    %c0_i32_0 = arith.constant 0 : i32
    return %arg0, %c0_i32, %arg2 : i32, i32, i32
  }
  func.func @transform_2(%arg0: i32, %arg1: i32, %arg2: i32) -> (i32, i32, i32) {
    %c0_i32 = arith.constant 0 : i32
    %c0_i32_0 = arith.constant 0 : i32
    return %arg0, %c0_i32, %arg2 : i32, i32, i32
  }
  func.func @transform_3(%arg0: i32, %arg1: i32, %arg2: i32) -> (i32, i32, i32) {
    %c0_i32 = arith.constant 0 : i32
    %c0_i32_0 = arith.constant 0 : i32
    return %arg0, %c0_i32, %arg1 : i32, i32, i32
  }
  func.func @transform_4(%arg0: i32, %arg1: i32, %arg2: i32) -> (i32, i32, i32) {
    %c0_i32 = arith.constant 0 : i32
    %c0_i32_0 = arith.constant 0 : i32
    return %arg0, %c0_i32, %arg1 : i32, i32, i32
  }
}

</mosaic_0001>

<llo_original>
// kernel: tpu_custom_call.1
$region0: #{tpu_custom_call.1}
  #allocation0 [shape = 'u32[]', space=smem, size = 0x4, offset = 0x4, fixed_abs, tag = 'smem constant byte address 0x4 - core index']
  #allocation1 [shape = 'u32[72,128]{1,0:T(1,128)}', space=vmem, size = 0x9000, scoped, tag = 'internal scratch']
  #allocation2 [shape = 'f32[256,1]{1,0:T(8,128)}', space=vmem, size = 0x20000, scoped, tag = 'scratch operand']
  #allocation3 [shape = 'f32[256,1]{1,0:T(8,128)}', space=vmem, size = 0x20000, scoped, tag = 'scratch operand']
  #allocation4 [shape = 'f32[256,32]{1,0:T(8,128)}', space=vmem, size = 0x20000, scoped, tag = 'scratch operand']
  %s0 = inlined_call_operand.vmem [shape: f32[2,256,4], index: 0, kind: input, shape index: {}]
  %s1 = inlined_call_operand.vmem [shape: bf16[2,4,256], index: 1, kind: input, shape index: {}]
  %s2 = inlined_call_operand.vmem [shape: bf16[2,32,256], index: 2, kind: input, shape index: {}]
  %s3 = inlined_call_operand.vmem [shape: f32[2,32,256], index: 3, kind: input, shape index: {}]
  %s4 = inlined_call_operand.hbm [shape: f32[2,32,256], index: 4, kind: output, shape index: {}]
  %s5 = sld [smem:[#allocation0]]
  $region57: #{tpu_custom_call.1} parent=0
    _
  %s7 = ssub.s32 1, %s5
  %s8 = scalar_select 0, %s7, %s5
  $region1: #{tpu_custom_call.1} parent=0
    #allocation5 [shape = 'u8[65536]{0}', space=vmem, size = 0x10000, scoped, tag = 'output window, operand 0']
    #allocation6 [shape = 's32[2]{0}', space=sflag, size = 0x8, scoped, tag = 'scoped memory for tpu_custom_call.1']
    %9 = vsyncpa [#allocation6], 0
    %s10 = scalar_lea.sflag [#allocation6], 1
    %11 = vsyncpa %s10, 0
    loop: start=0, step=1, limit=4
    $region2: #{tpu_custom_call.1} parent=1 // loop_pre_header
      _
    $region3: #{tpu_custom_call.1} parent=1 // loop_header
      %s13 = sphi 0, %s17
      %p14 = scmp.ge.s32.totalorder %s13, 4
      %s20 = sphi 0, %s39
      %s21 = sphi 0, %s35
      %s22 = sphi 0, %s31
      %s23 = sphi 0, %s20
      %s24 = sphi 0, %s21
      %s25 = sphi 0, %s22
      %s26 = sphi 0, %s23
      %s27 = sphi 0, %s24
      %s28 = sphi 0, %s25
      %s44 = sphi 0, %s46
      %s47 = sphi 0, %s44
      %s48 = sphi 0, %s47
      %s64 = sphi 0, %s48
      %s72 = sphi 0, %s74
      %s75 = sphi 0, %s72
      %s76 = sphi 0, %s75
      %s92 = sphi 0, %s76
      %s100 = sphi 0, %s102
      %s103 = sphi 0, %s100
      %s104 = sphi 0, %s103
      %s120 = sphi 0, %s104
      %s128 = sphi 0, %s130
      %s131 = sphi 0, %s128
      %s132 = sphi 0, %s131
      %s148 = sphi 0, %s132
      %s156 = sphi 0, %s158
      %s159 = sphi 0, %s156
      %s160 = sphi 0, %s159
      %s176 = sphi 0, %s160
    $region4: #{tpu_custom_call.1} parent=1 // loop_header_branch
      %16 = sbr.rel (%p14) target = $region8
    $region5: #{tpu_custom_call.1} parent=1 // loop_body
      %s18 = ssub.s32 %s13, 1
      %s19 = ssub.s32 %s13, 2
      %s29 = sadd.s32 1, %s22
      %p30 = scmp.ge.s32.totalorder %s29, 1
      %s31 = scalar_select %p30, 0, %s29
      %s32 = sadd.s32 1, %s21
      %s33 = scalar_select %p30, %s32, %s21
      %p34 = scmp.ge.s32.totalorder %s33, 1
      %s35 = scalar_select %p34, 0, %s33
      %s36 = sadd.s32 1, %s20
      %s37 = scalar_select %p34, %s36, %s20
      %p38 = scmp.ge.s32.totalorder %s37, 2
      %s39 = scalar_select %p38, 0, %s37
      %s40 = ssub.s32 %s20, %s39
      %s41 = ssub.s32 %s21, %s35
      %s42 = sor.u32 %s40, %s41
      %p43 = scmp.eq.s32.totalorder %s42, 0
      %s45 = sadd.s32 %s44, 1
      %s46 = scalar_select %p43, %s44, %s45
      %p49 = pneg %p43
      %p50 = scmp.eq.s32.totalorder %s13, 1
      %p51 = por %p49, %p50
      %p52 = scmp.ne.s32.totalorder %s44, %s47
      %p53 = scmp.eq.s32.totalorder %s13, 0
      %p54 = por %p52, %p53
      %p55 = scmp.ne.s32.totalorder %s44, %s47
      %p56 = scmp.eq.s32.totalorder %s18, 1
      %p57 = por %p55, %p56
      %p58 = scmp.ne.s32.totalorder %s47, %s48
      %p59 = scmp.eq.s32.totalorder %s18, 0
      %p60 = por %p58, %p59
      %p61 = scmp.ne.s32.totalorder %s47, %s48
      %p62 = scmp.eq.s32.totalorder %s19, 1
      %p63 = por %p61, %p62
      %p65 = scmp.ne.s32.totalorder %s48, %s64
      %p66 = scmp.eq.s32.totalorder %s19, 0
      %p67 = por %p65, %p66
      %s68 = ssub.s32 %s20, %s39
      %s69 = ssub.s32 %s22, %s31
      %s70 = sor.u32 %s68, %s69
      %p71 = scmp.eq.s32.totalorder %s70, 0
      %s73 = sadd.s32 %s72, 1
      %s74 = scalar_select %p71, %s72, %s73
      %p77 = pneg %p71
      %p78 = scmp.eq.s32.totalorder %s13, 1
      %p79 = por %p77, %p78
      %p80 = scmp.ne.s32.totalorder %s72, %s75
      %p81 = scmp.eq.s32.totalorder %s13, 0
      %p82 = por %p80, %p81
      %p83 = scmp.ne.s32.totalorder %s72, %s75
      %p84 = scmp.eq.s32.totalorder %s18, 1
      %p85 = por %p83, %p84
      %p86 = scmp.ne.s32.totalorder %s75, %s76
      %p87 = scmp.eq.s32.totalorder %s18, 0
      %p88 = por %p86, %p87
      %p89 = scmp.ne.s32.totalorder %s75, %s76
      %p90 = scmp.eq.s32.totalorder %s19, 1
      %p91 = por %p89, %p90
      %p93 = scmp.ne.s32.totalorder %s76, %s92
      %p94 = scmp.eq.s32.totalorder %s19, 0
      %p95 = por %p93, %p94
      %s96 = ssub.s32 %s20, %s39
      %s97 = ssub.s32 %s22, %s31
      %s98 = sor.u32 %s96, %s97
      %p99 = scmp.eq.s32.totalorder %s98, 0
      %s101 = sadd.s32 %s100, 1
      %s102 = scalar_select %p99, %s100, %s101
      %p105 = pneg %p99
      %p106 = scmp.eq.s32.totalorder %s13, 1
      %p107 = por %p105, %p106
      %p108 = scmp.ne.s32.totalorder %s100, %s103
      %p109 = scmp.eq.s32.totalorder %s13, 0
      %p110 = por %p108, %p109
      %p111 = scmp.ne.s32.totalorder %s100, %s103
      %p112 = scmp.eq.s32.totalorder %s18, 1
      %p113 = por %p111, %p112
      %p114 = scmp.ne.s32.totalorder %s103, %s104
      %p115 = scmp.eq.s32.totalorder %s18, 0
      %p116 = por %p114, %p115
      %p117 = scmp.ne.s32.totalorder %s103, %s104
      %p118 = scmp.eq.s32.totalorder %s19, 1
      %p119 = por %p117, %p118
      %p121 = scmp.ne.s32.totalorder %s104, %s120
      %p122 = scmp.eq.s32.totalorder %s19, 0
      %p123 = por %p121, %p122
      %s124 = ssub.s32 %s20, %s39
      %s125 = ssub.s32 %s21, %s35
      %s126 = sor.u32 %s124, %s125
      %p127 = scmp.eq.s32.totalorder %s126, 0
      %s129 = sadd.s32 %s128, 1
      %s130 = scalar_select %p127, %s128, %s129
      %p133 = pneg %p127
      %p134 = scmp.eq.s32.totalorder %s13, 1
      %p135 = por %p133, %p134
      %p136 = scmp.ne.s32.totalorder %s128, %s131
      %p137 = scmp.eq.s32.totalorder %s13, 0
      %p138 = por %p136, %p137
      %p139 = scmp.ne.s32.totalorder %s128, %s131
      %p140 = scmp.eq.s32.totalorder %s18, 1
      %p141 = por %p139, %p140
      %p142 = scmp.ne.s32.totalorder %s131, %s132
      %p143 = scmp.eq.s32.totalorder %s18, 0
      %p144 = por %p142, %p143
      %p145 = scmp.ne.s32.totalorder %s131, %s132
      %p146 = scmp.eq.s32.totalorder %s19, 1
      %p147 = por %p145, %p146
      %p149 = scmp.ne.s32.totalorder %s132, %s148
      %p150 = scmp.eq.s32.totalorder %s19, 0
      %p151 = por %p149, %p150
      %s152 = ssub.s32 %s20, %s39
      %s153 = ssub.s32 %s21, %s35
      %s154 = sor.u32 %s152, %s153
      %p155 = scmp.eq.s32.totalorder %s154, 0
      %s157 = sadd.s32 %s156, 1
      %s158 = scalar_select %p155, %s156, %s157
      %p161 = pneg %p155
      %p162 = scmp.eq.s32.totalorder %s13, 1
      %p163 = por %p161, %p162
      %p164 = scmp.ne.s32.totalorder %s156, %s159
      %p165 = scmp.eq.s32.totalorder %s13, 0
      %p166 = por %p164, %p165
      %p167 = scmp.ne.s32.totalorder %s156, %s159
      %p168 = scmp.eq.s32.totalorder %s18, 1
      %p169 = por %p167, %p168
      %p170 = scmp.ne.s32.totalorder %s159, %s160
      %p171 = scmp.eq.s32.totalorder %s18, 0
      %p172 = por %p170, %p171
      %p173 = scmp.ne.s32.totalorder %s159, %s160
      %p174 = scmp.eq.s32.totalorder %s19, 1
      %p175 = por %p173, %p174
      %p177 = scmp.ne.s32.totalorder %s160, %s176
      %p178 = scmp.eq.s32.totalorder %s19, 0
      %p179 = por %p177, %p178
      %p180 = scmp.le.s32.totalorder 1, %s13
      %p181 = scmp.lt.s32.totalorder %s13, 3
      %p182 = pnand %p180, %p181
      %p183 = pneg %p182
      // Predicated region
      $region9: #{tpu_custom_call.1} parent=5 // pred_check
        _
      $region10: #{tpu_custom_call.1} parent=5 // pred_check_branch
        %185 = sbr.rel (%p182) target = $region12
      $region11: #{tpu_custom_call.1} parent=5 // pred_region
        %s186 = ssub.s32 %s13, 1
      $region12: #{tpu_custom_call.1} parent=5 // pred_fallthru
        _
      %p187 = scmp.lt.s32.totalorder %s13, 2
      // Predicated region
      $region13: #{tpu_custom_call.1} parent=5 // pred_check
        %p188 = pneg %p187
      $region14: #{tpu_custom_call.1} parent=5 // pred_check_branch
        %190 = sbr.rel (%p188) target = $region16
      $region15: #{tpu_custom_call.1} parent=5 // pred_region
        // Predicated region
        $region17: #{tpu_custom_call.1} parent=15 // pred_check
          %p191 = pneg %p54
        $region18: #{tpu_custom_call.1} parent=15 // pred_check_branch
          %193 = sbr.rel (%p191) target = $region20
        $region19: #{tpu_custom_call.1} parent=15 // pred_region
          %s194 = smul.u32 32, %s21
          %p195 = scmp.lt.s32.totalorder %s20, 1
          %s196 = scalar_select %p195, %s20, 1
          %p197 = scmp.lt.s32.totalorder %s194, 31
          %s198 = scalar_select %p197, %s194, 31
          %s199 = smul.addr %s196, 32
          %s200 = sadd.s32 %s198, %s199
          %s201 = smul.addr %s200, 8
          %s202 = scalar_lea.vmem %s0, %s201
          %s203 = smul.u32 32, %s21
        $region20: #{tpu_custom_call.1} parent=15 // pred_fallthru
          _
        // Predicated region
        $region21: #{tpu_custom_call.1} parent=15 // pred_check
          %p204 = pneg %p82
        $region22: #{tpu_custom_call.1} parent=15 // pred_check_branch
          %206 = sbr.rel (%p204) target = $region24
        $region23: #{tpu_custom_call.1} parent=15 // pred_region
          %s207 = smul.u32 2, %s22
          %p208 = scmp.lt.s32.totalorder %s20, 1
          %s209 = scalar_select %p208, %s20, 1
          %p210 = scmp.lt.s32.totalorder %s207, 1
          %s211 = scalar_select %p210, %s207, 1
          %s212 = smul.addr %s209, 2
          %s213 = sadd.s32 %s211, %s212
          %s214 = smul.addr %s213, 2
          %s215 = scalar_lea.vmem %s1, %s214
          %s216 = smul.u32 2, %s22
        $region24: #{tpu_custom_call.1} parent=15 // pred_fallthru
          _
        // Predicated region
        $region25: #{tpu_custom_call.1} parent=15 // pred_check
          %p217 = pneg %p110
        $region26: #{tpu_custom_call.1} parent=15 // pred_check_branch
          %219 = sbr.rel (%p217) target = $region28
        $region27: #{tpu_custom_call.1} parent=15 // pred_region
          %s220 = smul.u32 2, %s22
          %p221 = scmp.lt.s32.totalorder %s20, 1
          %s222 = scalar_select %p221, %s20, 1
          %p223 = scmp.lt.s32.totalorder %s220, 1
          %s224 = scalar_select %p223, %s220, 1
          %s225 = smul.addr %s222, 8
          %s226 = sadd.s32 %s224, %s225
          %s227 = smul.addr %s226, 4
          %s228 = scalar_lea.vmem %s2, %s227
          %s229 = smul.u32 2, %s22
        $region28: #{tpu_custom_call.1} parent=15 // pred_fallthru
          _
        // Predicated region
        $region29: #{tpu_custom_call.1} parent=15 // pred_check
          %p230 = pneg %p138
        $region30: #{tpu_custom_call.1} parent=15 // pred_check_branch
          %232 = sbr.rel (%p230) target = $region32
        $region31: #{tpu_custom_call.1} parent=15 // pred_region
          %s233 = smul.u32 2, %s21
          %p234 = scmp.lt.s32.totalorder %s20, 1
          %s235 = scalar_select %p234, %s20, 1
          %p236 = scmp.lt.s32.totalorder %s233, 1
          %s237 = scalar_select %p236, %s233, 1
          %s238 = smul.addr %s235, 8
          %s239 = sadd.s32 %s237, %s238
          %s240 = smul.addr %s239, 8
          %s241 = scalar_lea.vmem %s3, %s240
          %s242 = smul.u32 2, %s21
        $region32: #{tpu_custom_call.1} parent=15 // pred_fallthru
          _
      $region16: #{tpu_custom_call.1} parent=5 // pred_fallthru
        _
      %p243 = scmp.le.s32.totalorder 1, %s13
      %p244 = scmp.lt.s32.totalorder %s13, 3
      %p245 = pnand %p243, %p244
      %p246 = pneg %p245
      // Predicated region
      $region33: #{tpu_custom_call.1} parent=5 // pred_check
        _
      $region34: #{tpu_custom_call.1} parent=5 // pred_check_branch
        %248 = sbr.rel (%p245) target = $region36
      $region35: #{tpu_custom_call.1} parent=5 // pred_region
        %s249 = ssub.s32 %s13, 1
        %s250 = smul.u32 32, %s24
        %p251 = scmp.lt.s32.totalorder %s23, 1
        %s252 = scalar_select %p251, %s23, 1
        %p253 = scmp.lt.s32.totalorder %s250, 31
        %s254 = scalar_select %p253, %s250, 31
        %s255 = smul.addr %s252, 32
        %s256 = sadd.s32 %s254, %s255
        %s257 = smul.addr %s256, 8
        %s258 = scalar_lea.vmem %s0, %s257
        %p259 = pneg %p60
        %p260 = pneg %p57
        %s261 = smul.u32 2, %s25
        %p262 = scmp.lt.s32.totalorder %s23, 1
        %s263 = scalar_select %p262, %s23, 1
        %p264 = scmp.lt.s32.totalorder %s261, 1
        %s265 = scalar_select %p264, %s261, 1
        %s266 = smul.addr %s263, 2
        %s267 = sadd.s32 %s265, %s266
        %s268 = smul.addr %s267, 2
        %s269 = scalar_lea.vmem %s1, %s268
        %p270 = pneg %p88
        %p271 = pneg %p85
        %s272 = smul.u32 2, %s25
        %p273 = scmp.lt.s32.totalorder %s23, 1
        %s274 = scalar_select %p273, %s23, 1
        %p275 = scmp.lt.s32.totalorder %s272, 1
        %s276 = scalar_select %p275, %s272, 1
        %s277 = smul.addr %s274, 8
        %s278 = sadd.s32 %s276, %s277
        %s279 = smul.addr %s278, 4
        %s280 = scalar_lea.vmem %s2, %s279
        %p281 = pneg %p116
        %p282 = pneg %p113
        %s283 = smul.u32 2, %s24
        %p284 = scmp.lt.s32.totalorder %s23, 1
        %s285 = scalar_select %p284, %s23, 1
        %p286 = scmp.lt.s32.totalorder %s283, 1
        %s287 = scalar_select %p286, %s283, 1
        %s288 = smul.addr %s285, 8
        %s289 = sadd.s32 %s287, %s288
        %s290 = smul.addr %s289, 8
        %s291 = scalar_lea.vmem %s3, %s290
        %p292 = pneg %p144
        %p293 = pneg %p141
        %p294 = pneg %p172
        %p295 = pneg %p169
        %s296 = sand.u32 %s159, 1
        %s297 = scalar_lea.sflag [#allocation6], %s296
        %s298 = sand.u32 %s159, 1
        %s299 = smul.addr %s298, 64
        %s300 = scalar_lea.vmem [#allocation5], %s299
        %s301 = smul.u32 32, %s24
        %p302 = scmp.lt.s32.totalorder %s23, 1
        %s303 = scalar_select %p302, %s23, 1
        %p304 = scmp.lt.s32.totalorder %s301, 31
        %s305 = scalar_select %p304, %s301, 31
        %s306 = smul.addr %s303, 32
        %s307 = sadd.s32 %s305, %s306
        %s308 = smul.addr %s307, 8
        %s309 = scalar_lea.vmem %s0, %s308
        %s310 = smul.u32 32, %s24
        %s311 = smul.u32 2, %s25
        %p312 = scmp.lt.s32.totalorder %s23, 1
        %s313 = scalar_select %p312, %s23, 1
        %p314 = scmp.lt.s32.totalorder %s311, 1
        %s315 = scalar_select %p314, %s311, 1
        %s316 = smul.addr %s313, 2
        %s317 = sadd.s32 %s315, %s316
        %s318 = smul.addr %s317, 2
        %s319 = scalar_lea.vmem %s1, %s318
        %s320 = smul.u32 2, %s25
        %s321 = smul.u32 2, %s25
        %p322 = scmp.lt.s32.totalorder %s23, 1
        %s323 = scalar_select %p322, %s23, 1
        %p324 = scmp.lt.s32.totalorder %s321, 1
        %s325 = scalar_select %p324, %s321, 1
        %s326 = smul.addr %s323, 8
        %s327 = sadd.s32 %s325, %s326
        %s328 = smul.addr %s327, 4
        %s329 = scalar_lea.vmem %s2, %s328
        %s330 = smul.u32 2, %s25
        %s331 = smul.u32 2, %s24
        %p332 = scmp.lt.s32.totalorder %s23, 1
        %s333 = scalar_select %p332, %s23, 1
        %p334 = scmp.lt.s32.totalorder %s331, 1
        %s335 = scalar_select %p334, %s331, 1
        %s336 = smul.addr %s333, 8
        %s337 = sadd.s32 %s335, %s336
        %s338 = smul.addr %s337, 8
        %s339 = scalar_lea.vmem %s3, %s338
        %s340 = smul.u32 2, %s24
        %s341 = smul.u32 2, %s24
        %p342 = scmp.eq.s32.totalorder %s25, 0
        // Predicated region
        $region37: #{tpu_custom_call.1} parent=35 // pred_check
          %p343 = pneg %p342
        $region38: #{tpu_custom_call.1} parent=35 // pred_check_branch
          %345 = sbr.rel (%p343) target = $region40
        $region39: #{tpu_custom_call.1} parent=35 // pred_region
          %vm346 = vcmask 7168
          %347 = vst.msk [vmem:[#allocation2] sm:$0xff] %vm346, -inf
          %348 = vst.msk [vmem:[#allocation2 + $0x8] sm:$0xff] %vm346, -inf
          %349 = vst.msk [vmem:[#allocation2 + $0x10] sm:$0xff] %vm346, -inf
          %350 = vst.msk [vmem:[#allocation2 + $0x18] sm:$0xff] %vm346, -inf
          %351 = vst.msk [vmem:[#allocation2 + $0x20] sm:$0xff] %vm346, -inf
          %352 = vst.msk [vmem:[#allocation2 + $0x28] sm:$0xff] %vm346, -inf
          %353 = vst.msk [vmem:[#allocation2 + $0x30] sm:$0xff] %vm346, -inf
          %354 = vst.msk [vmem:[#allocation2 + $0x38] sm:$0xff] %vm346, -inf
          %355 = vst.msk [vmem:[#allocation2 + $0x40] sm:$0xff] %vm346, -inf
          %356 = vst.msk [vmem:[#allocation2 + $0x48] sm:$0xff] %vm346, -inf
          %357 = vst.msk [vmem:[#allocation2 + $0x50] sm:$0xff] %vm346, -inf
          %358 = vst.msk [vmem:[#allocation2 + $0x58] sm:$0xff] %vm346, -inf
          %359 = vst.msk [vmem:[#allocation2 + $0x60] sm:$0xff] %vm346, -inf
          %360 = vst.msk [vmem:[#allocation2 + $0x68] sm:$0xff] %vm346, -inf
          %361 = vst.msk [vmem:[#allocation2 + $0x70] sm:$0xff] %vm346, -inf
          %362 = vst.msk [vmem:[#allocation2 + $0x78] sm:$0xff] %vm346, -inf
          %363 = vst.msk [vmem:[#allocation2 + $0x80] sm:$0xff] %vm346, -inf
          %364 = vst.msk [vmem:[#allocation2 + $0x88] sm:$0xff] %vm346, -inf
          %365 = vst.msk [vmem:[#allocation2 + $0x90] sm:$0xff] %vm346, -inf
          %366 = vst.msk [vmem:[#allocation2 + $0x98] sm:$0xff] %vm346, -inf
          %367 = vst.msk [vmem:[#allocation2 + $0xa0] sm:$0xff] %vm346, -inf
          %368 = vst.msk [vmem:[#allocation2 + $0xa8] sm:$0xff] %vm346, -inf
          %369 = vst.msk [vmem:[#allocation2 + $0xb0] sm:$0xff] %vm346, -inf
          %370 = vst.msk [vmem:[#allocation2 + $0xb8] sm:$0xff] %vm346, -inf
          %371 = vst.msk [vmem:[#allocation2 + $0xc0] sm:$0xff] %vm346, -inf
          %372 = vst.msk [vmem:[#allocation2 + $0xc8] sm:$0xff] %vm346, -inf
          %373 = vst.msk [vmem:[#allocation2 + $0xd0] sm:$0xff] %vm346, -inf
          %374 = vst.msk [vmem:[#allocation2 + $0xd8] sm:$0xff] %vm346, -inf
          %375 = vst.msk [vmem:[#allocation2 + $0xe0] sm:$0xff] %vm346, -inf
          %376 = vst.msk [vmem:[#allocation2 + $0xe8] sm:$0xff] %vm346, -inf
          %377 = vst.msk [vmem:[#allocation2 + $0xf0] sm:$0xff] %vm346, -inf
          %378 = vst.msk [vmem:[#allocation2 + $0xf8] sm:$0xff] %vm346, -inf
          %379 = vst.msk [vmem:[#allocation3] sm:$0xff] %vm346, 0.0
          %380 = vst.msk [vmem:[#allocation3 + $0x8] sm:$0xff] %vm346, 0.0
          %381 = vst.msk [vmem:[#allocation3 + $0x10] sm:$0xff] %vm346, 0.0
          %382 = vst.msk [vmem:[#allocation3 + $0x18] sm:$0xff] %vm346, 0.0
          %383 = vst.msk [vmem:[#allocation3 + $0x20] sm:$0xff] %vm346, 0.0
          %384 = vst.msk [vmem:[#allocation3 + $0x28] sm:$0xff] %vm346, 0.0
          %385 = vst.msk [vmem:[#allocation3 + $0x30] sm:$0xff] %vm346, 0.0
          %386 = vst.msk [vmem:[#allocation3 + $0x38] sm:$0xff] %vm346, 0.0
          %387 = vst.msk [vmem:[#allocation3 + $0x40] sm:$0xff] %vm346, 0.0
          %388 = vst.msk [vmem:[#allocation3 + $0x48] sm:$0xff] %vm346, 0.0
          %389 = vst.msk [vmem:[#allocation3 + $0x50] sm:$0xff] %vm346, 0.0
          %390 = vst.msk [vmem:[#allocation3 + $0x58] sm:$0xff] %vm346, 0.0
          %391 = vst.msk [vmem:[#allocation3 + $0x60] sm:$0xff] %vm346, 0.0
          %392 = vst.msk [vmem:[#allocation3 + $0x68] sm:$0xff] %vm346, 0.0
          %393 = vst.msk [vmem:[#allocation3 + $0x70] sm:$0xff] %vm346, 0.0
          %394 = vst.msk [vmem:[#allocation3 + $0x78] sm:$0xff] %vm346, 0.0
          %395 = vst.msk [vmem:[#allocation3 + $0x80] sm:$0xff] %vm346, 0.0
          %396 = vst.msk [vmem:[#allocation3 + $0x88] sm:$0xff] %vm346, 0.0
          %397 = vst.msk [vmem:[#allocation3 + $0x90] sm:$0xff] %vm346, 0.0
          %398 = vst.msk [vmem:[#allocation3 + $0x98] sm:$0xff] %vm346, 0.0
          %399 = vst.msk [vmem:[#allocation3 + $0xa0] sm:$0xff] %vm346, 0.0
          %400 = vst.msk [vmem:[#allocation3 + $0xa8] sm:$0xff] %vm346, 0.0
          %401 = vst.msk [vmem:[#allocation3 + $0xb0] sm:$0xff] %vm346, 0.0
          %402 = vst.msk [vmem:[#allocation3 + $0xb8] sm:$0xff] %vm346, 0.0
          %403 = vst.msk [vmem:[#allocation3 + $0xc0] sm:$0xff] %vm346, 0.0
          %404 = vst.msk [vmem:[#allocation3 + $0xc8] sm:$0xff] %vm346, 0.0
          %405 = vst.msk [vmem:[#allocation3 + $0xd0] sm:$0xff] %vm346, 0.0
          %406 = vst.msk [vmem:[#allocation3 + $0xd8] sm:$0xff] %vm346, 0.0
          %407 = vst.msk [vmem:[#allocation3 + $0xe0] sm:$0xff] %vm346, 0.0
          %408 = vst.msk [vmem:[#allocation3 + $0xe8] sm:$0xff] %vm346, 0.0
          %409 = vst.msk [vmem:[#allocation3 + $0xf0] sm:$0xff] %vm346, 0.0
          %410 = vst.msk [vmem:[#allocation3 + $0xf8] sm:$0xff] %vm346, 0.0
          %vm411 = vcmask 261120
          %412 = vst.msk [vmem:[#allocation4] sm:$0xff] %vm411, 0.0
          %413 = vst.msk [vmem:[#allocation4 + $0x8] sm:$0xff] %vm411, 0.0
          %414 = vst.msk [vmem:[#allocation4 + $0x10] sm:$0xff] %vm411, 0.0
          %415 = vst.msk [vmem:[#allocation4 + $0x18] sm:$0xff] %vm411, 0.0
          %416 = vst.msk [vmem:[#allocation4 + $0x20] sm:$0xff] %vm411, 0.0
          %417 = vst.msk [vmem:[#allocation4 + $0x28] sm:$0xff] %vm411, 0.0
          %418 = vst.msk [vmem:[#allocation4 + $0x30] sm:$0xff] %vm411, 0.0
          %419 = vst.msk [vmem:[#allocation4 + $0x38] sm:$0xff] %vm411, 0.0
          %420 = vst.msk [vmem:[#allocation4 + $0x40] sm:$0xff] %vm411, 0.0
          %421 = vst.msk [vmem:[#allocation4 + $0x48] sm:$0xff] %vm411, 0.0
          %422 = vst.msk [vmem:[#allocation4 + $0x50] sm:$0xff] %vm411, 0.0
          %423 = vst.msk [vmem:[#allocation4 + $0x58] sm:$0xff] %vm411, 0.0
          %424 = vst.msk [vmem:[#allocation4 + $0x60] sm:$0xff] %vm411, 0.0
          %425 = vst.msk [vmem:[#allocation4 + $0x68] sm:$0xff] %vm411, 0.0
          %426 = vst.msk [vmem:[#allocation4 + $0x70] sm:$0xff] %vm411, 0.0
          %427 = vst.msk [vmem:[#allocation4 + $0x78] sm:$0xff] %vm411, 0.0
          %428 = vst.msk [vmem:[#allocation4 + $0x80] sm:$0xff] %vm411, 0.0
          %429 = vst.msk [vmem:[#allocation4 + $0x88] sm:$0xff] %vm411, 0.0
          %430 = vst.msk [vmem:[#allocation4 + $0x90] sm:$0xff] %vm411, 0.0
          %431 = vst.msk [vmem:[#allocation4 + $0x98] sm:$0xff] %vm411, 0.0
          %432 = vst.msk [vmem:[#allocation4 + $0xa0] sm:$0xff] %vm411, 0.0
          %433 = vst.msk [vmem:[#allocation4 + $0xa8] sm:$0xff] %vm411, 0.0
          %434 = vst.msk [vmem:[#allocation4 + $0xb0] sm:$0xff] %vm411, 0.0
          %435 = vst.msk [vmem:[#allocation4 + $0xb8] sm:$0xff] %vm411, 0.0
          %436 = vst.msk [vmem:[#allocation4 + $0xc0] sm:$0xff] %vm411, 0.0
          %437 = vst.msk [vmem:[#allocation4 + $0xc8] sm:$0xff] %vm411, 0.0
          %438 = vst.msk [vmem:[#allocation4 + $0xd0] sm:$0xff] %vm411, 0.0
          %439 = vst.msk [vmem:[#allocation4 + $0xd8] sm:$0xff] %vm411, 0.0
          %440 = vst.msk [vmem:[#allocation4 + $0xe0] sm:$0xff] %vm411, 0.0
          %441 = vst.msk [vmem:[#allocation4 + $0xe8] sm:$0xff] %vm411, 0.0
          %442 = vst.msk [vmem:[#allocation4 + $0xf0] sm:$0xff] %vm411, 0.0
          %443 = vst.msk [vmem:[#allocation4 + $0xf8] sm:$0xff] %vm411, 0.0
        $region40: #{tpu_custom_call.1} parent=35 // pred_fallthru
          _
        %v444 = vld [vmem:[%s309] sm:$0xff]
        %v445 = vld [vmem:[%s309 + $0x8] sm:$0xff]
        %v446 = vld [vmem:[%s309 + $0x10] sm:$0xff]
        %v447 = vld [vmem:[%s309 + $0x18] sm:$0xff]
        %v448 = vld [vmem:[%s309 + $0x20] sm:$0xff]
        %v449 = vld [vmem:[%s309 + $0x28] sm:$0xff]
        %v450 = vld [vmem:[%s309 + $0x30] sm:$0xff]
        %v451 = vld [vmem:[%s309 + $0x38] sm:$0xff]
        %v452 = vld [vmem:[%s309 + $0x40] sm:$0xff]
        %v453 = vld [vmem:[%s309 + $0x48] sm:$0xff]
        %v454 = vld [vmem:[%s309 + $0x50] sm:$0xff]
        %v455 = vld [vmem:[%s309 + $0x58] sm:$0xff]
        %v456 = vld [vmem:[%s309 + $0x60] sm:$0xff]
        %v457 = vld [vmem:[%s309 + $0x68] sm:$0xff]
        %v458 = vld [vmem:[%s309 + $0x70] sm:$0xff]
        %v459 = vld [vmem:[%s309 + $0x78] sm:$0xff]
        %v460 = vld [vmem:[%s309 + $0x80] sm:$0xff]
        %v461 = vld [vmem:[%s309 + $0x88] sm:$0xff]
        %v462 = vld [vmem:[%s309 + $0x90] sm:$0xff]
        %v463 = vld [vmem:[%s309 + $0x98] sm:$0xff]
        %v464 = vld [vmem:[%s309 + $0xa0] sm:$0xff]
        %v465 = vld [vmem:[%s309 + $0xa8] sm:$0xff]
        %v466 = vld [vmem:[%s309 + $0xb0] sm:$0xff]
        %v467 = vld [vmem:[%s309 + $0xb8] sm:$0xff]
        %v468 = vld [vmem:[%s309 + $0xc0] sm:$0xff]
        %v469 = vld [vmem:[%s309 + $0xc8] sm:$0xff]
        %v470 = vld [vmem:[%s309 + $0xd0] sm:$0xff]
        %v471 = vld [vmem:[%s309 + $0xd8] sm:$0xff]
        %v472 = vld [vmem:[%s309 + $0xe0] sm:$0xff]
        %v473 = vld [vmem:[%s309 + $0xe8] sm:$0xff]
        %v474 = vld [vmem:[%s309 + $0xf0] sm:$0xff]
        %v475 = vld [vmem:[%s309 + $0xf8] sm:$0xff]
        %v476 = vld [vmem:[%s319] sm:$0xf]
        %v477 = vunpack.c.l.bf16 %v476
        %v478 = vld [vmem:[%s329] sm:$0xff]
        %v479 = vld [vmem:[%s329 + $0x8] sm:$0xff]
        %v480 = vld [vmem:[%s329 + $0x10] sm:$0xff]
        %v481 = vld [vmem:[%s329 + $0x18] sm:$0xff]
        %v482 = vunpack.c.l.bf16 %v478
        %v483 = vunpack.c.h.bf16 %v478
        %v484 = vunpack.c.l.bf16 %v479
        %v485 = vunpack.c.h.bf16 %v479
        %v486 = vunpack.c.l.bf16 %v480
        %v487 = vunpack.c.h.bf16 %v480
        %v488 = vunpack.c.l.bf16 %v481
        %v489 = vunpack.c.h.bf16 %v481
        %491 = vst [vmem:[#allocation1] ss:$2 sm:$0xff] %v477
        %v492 = vld.sshfl [vmem:[#allocation1] sm:$0xff pattern:$0x75316420]
        %v493 = vld.sshfl [vmem:[#allocation1 + $0x8] sm:$0xff pattern:$0x75316420]
        %vm494 = vcmask 31744
        %v496 = vsel %vm494, %v444, 0
        %v499 = vsel %vm494, %v445, 0
        %v502 = vsel %vm494, %v446, 0
        %v505 = vsel %vm494, %v447, 0
        %v508 = vsel %vm494, %v448, 0
        %v511 = vsel %vm494, %v449, 0
        %v514 = vsel %vm494, %v450, 0
        %v517 = vsel %vm494, %v451, 0
        %v520 = vsel %vm494, %v452, 0
        %v523 = vsel %vm494, %v453, 0
        %v526 = vsel %vm494, %v454, 0
        %v529 = vsel %vm494, %v455, 0
        %v532 = vsel %vm494, %v456, 0
        %v535 = vsel %vm494, %v457, 0
        %v538 = vsel %vm494, %v458, 0
        %v541 = vsel %vm494, %v459, 0
        %v544 = vsel %vm494, %v460, 0
        %v547 = vsel %vm494, %v461, 0
        %v550 = vsel %vm494, %v462, 0
        %v553 = vsel %vm494, %v463, 0
        %v556 = vsel %vm494, %v464, 0
        %v559 = vsel %vm494, %v465, 0
        %v562 = vsel %vm494, %v466, 0
        %v565 = vsel %vm494, %v467, 0
        %v568 = vsel %vm494, %v468, 0
        %v571 = vsel %vm494, %v469, 0
        %v574 = vsel %vm494, %v470, 0
        %v577 = vsel %vm494, %v471, 0
        %v580 = vsel %vm494, %v472, 0
        %v583 = vsel %vm494, %v473, 0
        %v586 = vsel %vm494, %v474, 0
        %v589 = vsel %vm494, %v475, 0
        %vm591 = vcmask 1043456
        %v592 = vsel %vm591, %v492, 0
        %v594 = vsel %vm591, %v493, 0
        %596 = vmatpush.msra.mxu0 0.0
        %597 = vmatpush.msra.mxu0 0.0
        %598 = vmatpush.msra.mxu0 0.0
        %599 = vmatpush.msra.mxu0 0.0
        %600 = vmatpush.msra.mxu0 0.0
        %601 = vmatpush.msra.mxu0 0.0
        %602 = vmatpush.msra.mxu0 0.0
        %603 = vmatpush.msra.mxu0 0.0
        %604 = vmatpush.msra.mxu0 0.0
        %605 = vmatpush.msra.mxu0 0.0
        %606 = vmatpush.msra.mxu0 0.0
        %607 = vmatpush.msra.mxu0 0.0
        %608 = vmatpush.msra.mxu0 0.0
        %609 = vmatpush.msra.mxu0 0.0
        %610 = vmatpush.msra.mxu0 0.0
        %611 = vmatpush.msra.mxu0 %v592
        %612 = vmatmul.f32.gmra.mxu0 %v496
        %v613 = vpop.f32.mrf.mxu0
        %v614 = vadd.f32 0.0, %v613
        %615 = vmatmul.f32.gmra.mxu0 %v499
        %v616 = vpop.f32.mrf.mxu0
        %v617 = vadd.f32 0.0, %v616
        %618 = vmatmul.f32.gmra.mxu0 %v502
        %v619 = vpop.f32.mrf.mxu0
        %v620 = vadd.f32 0.0, %v619
        %621 = vmatmul.f32.gmra.mxu0 %v505
        %v622 = vpop.f32.mrf.mxu0
        %v623 = vadd.f32 0.0, %v622
        %624 = vmatmul.f32.gmra.mxu0 %v508
        %v625 = vpop.f32.mrf.mxu0
        %v626 = vadd.f32 0.0, %v625
        %627 = vmatmul.f32.gmra.mxu0 %v511
        %v628 = vpop.f32.mrf.mxu0
        %v629 = vadd.f32 0.0, %v628
        %630 = vmatmul.f32.gmra.mxu0 %v514
        %v631 = vpop.f32.mrf.mxu0
        %v632 = vadd.f32 0.0, %v631
        %633 = vmatmul.f32.gmra.mxu0 %v517
        %v634 = vpop.f32.mrf.mxu0
        %v635 = vadd.f32 0.0, %v634
        %636 = vmatmul.f32.gmra.mxu0 %v520
        %v637 = vpop.f32.mrf.mxu0
        %v638 = vadd.f32 0.0, %v637
        %639 = vmatmul.f32.gmra.mxu0 %v523
        %v640 = vpop.f32.mrf.mxu0
        %v641 = vadd.f32 0.0, %v640
        %642 = vmatmul.f32.gmra.mxu0 %v526
        %v643 = vpop.f32.mrf.mxu0
        %v644 = vadd.f32 0.0, %v643
        %645 = vmatmul.f32.gmra.mxu0 %v529
        %v646 = vpop.f32.mrf.mxu0
        %v647 = vadd.f32 0.0, %v646
        %648 = vmatmul.f32.gmra.mxu0 %v532
        %v649 = vpop.f32.mrf.mxu0
        %v650 = vadd.f32 0.0, %v649
        %651 = vmatmul.f32.gmra.mxu0 %v535
        %v652 = vpop.f32.mrf.mxu0
        %v653 = vadd.f32 0.0, %v652
        %654 = vmatmul.f32.gmra.mxu0 %v538
        %v655 = vpop.f32.mrf.mxu0
        %v656 = vadd.f32 0.0, %v655
        %657 = vmatmul.f32.gmra.mxu0 %v541
        %v658 = vpop.f32.mrf.mxu0
        %v659 = vadd.f32 0.0, %v658
        %660 = vmatmul.f32.gmra.mxu0 %v544
        %v661 = vpop.f32.mrf.mxu0
        %v662 = vadd.f32 0.0, %v661
        %663 = vmatmul.f32.gmra.mxu0 %v547
        %v664 = vpop.f32.mrf.mxu0
        %v665 = vadd.f32 0.0, %v664
        %666 = vmatmul.f32.gmra.mxu0 %v550
        %v667 = vpop.f32.mrf.mxu0
        %v668 = vadd.f32 0.0, %v667
        %669 = vmatmul.f32.gmra.mxu0 %v553
        %v670 = vpop.f32.mrf.mxu0
        %v671 = vadd.f32 0.0, %v670
        %672 = vmatmul.f32.gmra.mxu0 %v556
        %v673 = vpop.f32.mrf.mxu0
        %v674 = vadd.f32 0.0, %v673
        %675 = vmatmul.f32.gmra.mxu0 %v559
        %v676 = vpop.f32.mrf.mxu0
        %v677 = vadd.f32 0.0, %v676
        %678 = vmatmul.f32.gmra.mxu0 %v562
        %v679 = vpop.f32.mrf.mxu0
        %v680 = vadd.f32 0.0, %v679
        %681 = vmatmul.f32.gmra.mxu0 %v565
        %v682 = vpop.f32.mrf.mxu0
        %v683 = vadd.f32 0.0, %v682
        %684 = vmatmul.f32.gmra.mxu0 %v568
        %v685 = vpop.f32.mrf.mxu0
        %v686 = vadd.f32 0.0, %v685
        %687 = vmatmul.f32.gmra.mxu0 %v571
        %v688 = vpop.f32.mrf.mxu0
        %v689 = vadd.f32 0.0, %v688
        %690 = vmatmul.f32.gmra.mxu0 %v574
        %v691 = vpop.f32.mrf.mxu0
        %v692 = vadd.f32 0.0, %v691
        %693 = vmatmul.f32.gmra.mxu0 %v577
        %v694 = vpop.f32.mrf.mxu0
        %v695 = vadd.f32 0.0, %v694
        %696 = vmatmul.f32.gmra.mxu0 %v580
        %v697 = vpop.f32.mrf.mxu0
        %v698 = vadd.f32 0.0, %v697
        %699 = vmatmul.f32.gmra.mxu0 %v583
        %v700 = vpop.f32.mrf.mxu0
        %v701 = vadd.f32 0.0, %v700
        %702 = vmatmul.f32.gmra.mxu0 %v586
        %v703 = vpop.f32.mrf.mxu0
        %v704 = vadd.f32 0.0, %v703
        %705 = vmatmul.f32.gmra.mxu0 %v589
        %v706 = vpop.f32.mrf.mxu0
        %v707 = vadd.f32 0.0, %v706
        %708 = vdwg.mxu0
        %709 = vmatpush.msra.mxu0 0.0
        %710 = vmatpush.msra.mxu0 0.0
        %711 = vmatpush.msra.mxu0 0.0
        %712 = vmatpush.msra.mxu0 0.0
        %713 = vmatpush.msra.mxu0 0.0
        %714 = vmatpush.msra.mxu0 0.0
        %715 = vmatpush.msra.mxu0 0.0
        %716 = vmatpush.msra.mxu0 0.0
        %717 = vmatpush.msra.mxu0 0.0
        %718 = vmatpush.msra.mxu0 0.0
        %719 = vmatpush.msra.mxu0 0.0
        %720 = vmatpush.msra.mxu0 0.0
        %721 = vmatpush.msra.mxu0 0.0
        %722 = vmatpush.msra.mxu0 0.0
        %723 = vmatpush.msra.mxu0 0.0
        %724 = vmatpush.msra.mxu0 %v594
        %725 = vmatmul.f32.gmra.mxu0 %v496
        %v726 = vpop.f32.mrf.mxu0
        %v727 = vadd.f32 0.0, %v726
        %728 = vmatmul.f32.gmra.mxu0 %v499
        %v729 = vpop.f32.mrf.mxu0
        %v730 = vadd.f32 0.0, %v729
        %731 = vmatmul.f32.gmra.mxu0 %v502
        %v732 = vpop.f32.mrf.mxu0
        %v733 = vadd.f32 0.0, %v732
        %734 = vmatmul.f32.gmra.mxu0 %v505
        %v735 = vpop.f32.mrf.mxu0
        %v736 = vadd.f32 0.0, %v735
        %737 = vmatmul.f32.gmra.mxu0 %v508
        %v738 = vpop.f32.mrf.mxu0
        %v739 = vadd.f32 0.0, %v738
        %740 = vmatmul.f32.gmra.mxu0 %v511
        %v741 = vpop.f32.mrf.mxu0
        %v742 = vadd.f32 0.0, %v741
        %743 = vmatmul.f32.gmra.mxu0 %v514
        %v744 = vpop.f32.mrf.mxu0
        %v745 = vadd.f32 0.0, %v744
        %746 = vmatmul.f32.gmra.mxu0 %v517
        %v747 = vpop.f32.mrf.mxu0
        %v748 = vadd.f32 0.0, %v747
        %749 = vmatmul.f32.gmra.mxu0 %v520
        %v750 = vpop.f32.mrf.mxu0
        %v751 = vadd.f32 0.0, %v750
        %752 = vmatmul.f32.gmra.mxu0 %v523
        %v753 = vpop.f32.mrf.mxu0
        %v754 = vadd.f32 0.0, %v753
        %755 = vmatmul.f32.gmra.mxu0 %v526
        %v756 = vpop.f32.mrf.mxu0
        %v757 = vadd.f32 0.0, %v756
        %758 = vmatmul.f32.gmra.mxu0 %v529
        %v759 = vpop.f32.mrf.mxu0
        %v760 = vadd.f32 0.0, %v759
        %761 = vmatmul.f32.gmra.mxu0 %v532
        %v762 = vpop.f32.mrf.mxu0
        %v763 = vadd.f32 0.0, %v762
        %764 = vmatmul.f32.gmra.mxu0 %v535
        %v765 = vpop.f32.mrf.mxu0
        %v766 = vadd.f32 0.0, %v765
        %767 = vmatmul.f32.gmra.mxu0 %v538
        %v768 = vpop.f32.mrf.mxu0
        %v769 = vadd.f32 0.0, %v768
        %770 = vmatmul.f32.gmra.mxu0 %v541
        %v771 = vpop.f32.mrf.mxu0
        %v772 = vadd.f32 0.0, %v771
        %773 = vmatmul.f32.gmra.mxu0 %v544
        %v774 = vpop.f32.mrf.mxu0
        %v775 = vadd.f32 0.0, %v774
        %776 = vmatmul.f32.gmra.mxu0 %v547
        %v777 = vpop.f32.mrf.mxu0
        %v778 = vadd.f32 0.0, %v777
        %779 = vmatmul.f32.gmra.mxu0 %v550
        %v780 = vpop.f32.mrf.mxu0
        %v781 = vadd.f32 0.0, %v780
        %782 = vmatmul.f32.gmra.mxu0 %v553
        %v783 = vpop.f32.mrf.mxu0
        %v784 = vadd.f32 0.0, %v783
        %785 = vmatmul.f32.gmra.mxu0 %v556
        %v786 = vpop.f32.mrf.mxu0
        %v787 = vadd.f32 0.0, %v786
        %788 = vmatmul.f32.gmra.mxu0 %v559
        %v789 = vpop.f32.mrf.mxu0
        %v790 = vadd.f32 0.0, %v789
        %791 = vmatmul.f32.gmra.mxu0 %v562
        %v792 = vpop.f32.mrf.mxu0
        %v793 = vadd.f32 0.0, %v792
        %794 = vmatmul.f32.gmra.mxu0 %v565
        %v795 = vpop.f32.mrf.mxu0
        %v796 = vadd.f32 0.0, %v795
        %797 = vmatmul.f32.gmra.mxu0 %v568
        %v798 = vpop.f32.mrf.mxu0
        %v799 = vadd.f32 0.0, %v798
        %800 = vmatmul.f32.gmra.mxu0 %v571
        %v801 = vpop.f32.mrf.mxu0
        %v802 = vadd.f32 0.0, %v801
        %803 = vmatmul.f32.gmra.mxu0 %v574
        %v804 = vpop.f32.mrf.mxu0
        %v805 = vadd.f32 0.0, %v804
        %806 = vmatmul.f32.gmra.mxu0 %v577
        %v807 = vpop.f32.mrf.mxu0
        %v808 = vadd.f32 0.0, %v807
        %809 = vmatmul.f32.gmra.mxu0 %v580
        %v810 = vpop.f32.mrf.mxu0
        %v811 = vadd.f32 0.0, %v810
        %812 = vmatmul.f32.gmra.mxu0 %v583
        %v813 = vpop.f32.mrf.mxu0
        %v814 = vadd.f32 0.0, %v813
        %815 = vmatmul.f32.gmra.mxu0 %v586
        %v816 = vpop.f32.mrf.mxu0
        %v817 = vadd.f32 0.0, %v816
        %818 = vmatmul.f32.gmra.mxu0 %v589
        %v819 = vpop.f32.mrf.mxu0
        %v820 = vadd.f32 0.0, %v819
        %821 = vdwg.mxu0
        %v822 = vld [vmem:[#allocation2] sm:$0xff]
        %v823 = vld [vmem:[#allocation2 + $0x8] sm:$0xff]
        %v824 = vld [vmem:[#allocation2 + $0x10] sm:$0xff]
        %v825 = vld [vmem:[#allocation2 + $0x18] sm:$0xff]
        %v826 = vld [vmem:[#allocation2 + $0x20] sm:$0xff]
        %v827 = vld [vmem:[#allocation2 + $0x28] sm:$0xff]
        %v828 = vld [vmem:[#allocation2 + $0x30] sm:$0xff]
        %v829 = vld [vmem:[#allocation2 + $0x38] sm:$0xff]
        %v830 = vld [vmem:[#allocation2 + $0x40] sm:$0xff]
        %v831 = vld [vmem:[#allocation2 + $0x48] sm:$0xff]
        %v832 = vld [vmem:[#allocation2 + $0x50] sm:$0xff]
        %v833 = vld [vmem:[#allocation2 + $0x58] sm:$0xff]
        %v834 = vld [vmem:[#allocation2 + $0x60] sm:$0xff]
        %v835 = vld [vmem:[#allocation2 + $0x68] sm:$0xff]
        %v836 = vld [vmem:[#allocation2 + $0x70] sm:$0xff]
        %v837 = vld [vmem:[#allocation2 + $0x78] sm:$0xff]
        %v838 = vld [vmem:[#allocation2 + $0x80] sm:$0xff]
        %v839 = vld [vmem:[#allocation2 + $0x88] sm:$0xff]
        %v840 = vld [vmem:[#allocation2 + $0x90] sm:$0xff]
        %v841 = vld [vmem:[#allocation2 + $0x98] sm:$0xff]
        %v842 = vld [vmem:[#allocation2 + $0xa0] sm:$0xff]
        %v843 = vld [vmem:[#allocation2 + $0xa8] sm:$0xff]
        %v844 = vld [vmem:[#allocation2 + $0xb0] sm:$0xff]
        %v845 = vld [vmem:[#allocation2 + $0xb8] sm:$0xff]
        %v846 = vld [vmem:[#allocation2 + $0xc0] sm:$0xff]
        %v847 = vld [vmem:[#allocation2 + $0xc8] sm:$0xff]
        %v848 = vld [vmem:[#allocation2 + $0xd0] sm:$0xff]
        %v849 = vld [vmem:[#allocation2 + $0xd8] sm:$0xff]
        %v850 = vld [vmem:[#allocation2 + $0xe0] sm:$0xff]
        %v851 = vld [vmem:[#allocation2 + $0xe8] sm:$0xff]
        %v852 = vld [vmem:[#allocation2 + $0xf0] sm:$0xff]
        %v853 = vld [vmem:[#allocation2 + $0xf8] sm:$0xff]
        %v854 = vmax.f32 %v614, %v727
        %855 = vmax.xlane.f32.xlu0 %v854
        %v856 = vpop.xlane.xlu0 %855
        %v857 = vmax.f32 %v617, %v730
        %858 = vmax.xlane.f32.xlu0 %v857
        %v859 = vpop.xlane.xlu0 %858
        %v860 = vmax.f32 %v620, %v733
        %861 = vmax.xlane.f32.xlu0 %v860
        %v862 = vpop.xlane.xlu0 %861
        %v863 = vmax.f32 %v623, %v736
        %864 = vmax.xlane.f32.xlu0 %v863
        %v865 = vpop.xlane.xlu0 %864
        %v866 = vmax.f32 %v626, %v739
        %867 = vmax.xlane.f32.xlu0 %v866
        %v868 = vpop.xlane.xlu0 %867
        %v869 = vmax.f32 %v629, %v742
        %870 = vmax.xlane.f32.xlu0 %v869
        %v871 = vpop.xlane.xlu0 %870
        %v872 = vmax.f32 %v632, %v745
        %873 = vmax.xlane.f32.xlu0 %v872
        %v874 = vpop.xlane.xlu0 %873
        %v875 = vmax.f32 %v635, %v748
        %876 = vmax.xlane.f32.xlu0 %v875
        %v877 = vpop.xlane.xlu0 %876
        %v878 = vmax.f32 %v638, %v751
        %879 = vmax.xlane.f32.xlu0 %v878
        %v880 = vpop.xlane.xlu0 %879
        %v881 = vmax.f32 %v641, %v754
        %882 = vmax.xlane.f32.xlu0 %v881
        %v883 = vpop.xlane.xlu0 %882
        %v884 = vmax.f32 %v644, %v757
        %885 = vmax.xlane.f32.xlu0 %v884
        %v886 = vpop.xlane.xlu0 %885
        %v887 = vmax.f32 %v647, %v760
        %888 = vmax.xlane.f32.xlu0 %v887
        %v889 = vpop.xlane.xlu0 %888
        %v890 = vmax.f32 %v650, %v763
        %891 = vmax.xlane.f32.xlu0 %v890
        %v892 = vpop.xlane.xlu0 %891
        %v893 = vmax.f32 %v653, %v766
        %894 = vmax.xlane.f32.xlu0 %v893
        %v895 = vpop.xlane.xlu0 %894
        %v896 = vmax.f32 %v656, %v769
        %897 = vmax.xlane.f32.xlu0 %v896
        %v898 = vpop.xlane.xlu0 %897
        %v899 = vmax.f32 %v659, %v772
        %900 = vmax.xlane.f32.xlu0 %v899
        %v901 = vpop.xlane.xlu0 %900
        %v902 = vmax.f32 %v662, %v775
        %903 = vmax.xlane.f32.xlu0 %v902
        %v904 = vpop.xlane.xlu0 %903
        %v905 = vmax.f32 %v665, %v778
        %906 = vmax.xlane.f32.xlu0 %v905
        %v907 = vpop.xlane.xlu0 %906
        %v908 = vmax.f32 %v668, %v781
        %909 = vmax.xlane.f32.xlu0 %v908
        %v910 = vpop.xlane.xlu0 %909
        %v911 = vmax.f32 %v671, %v784
        %912 = vmax.xlane.f32.xlu0 %v911
        %v913 = vpop.xlane.xlu0 %912
        %v914 = vmax.f32 %v674, %v787
        %915 = vmax.xlane.f32.xlu0 %v914
        %v916 = vpop.xlane.xlu0 %915
        %v917 = vmax.f32 %v677, %v790
        %918 = vmax.xlane.f32.xlu0 %v917
        %v919 = vpop.xlane.xlu0 %918
        %v920 = vmax.f32 %v680, %v793
        %921 = vmax.xlane.f32.xlu0 %v920
        %v922 = vpop.xlane.xlu0 %921
        %v923 = vmax.f32 %v683, %v796
        %924 = vmax.xlane.f32.xlu0 %v923
        %v925 = vpop.xlane.xlu0 %924
        %v926 = vmax.f32 %v686, %v799
        %927 = vmax.xlane.f32.xlu0 %v926
        %v928 = vpop.xlane.xlu0 %927
        %v929 = vmax.f32 %v689, %v802
        %930 = vmax.xlane.f32.xlu0 %v929
        %v931 = vpop.xlane.xlu0 %930
        %v932 = vmax.f32 %v692, %v805
        %933 = vmax.xlane.f32.xlu0 %v932
        %v934 = vpop.xlane.xlu0 %933
        %v935 = vmax.f32 %v695, %v808
        %936 = vmax.xlane.f32.xlu0 %v935
        %v937 = vpop.xlane.xlu0 %936
        %v938 = vmax.f32 %v698, %v811
        %939 = vmax.xlane.f32.xlu0 %v938
        %v940 = vpop.xlane.xlu0 %939
        %v941 = vmax.f32 %v701, %v814
        %942 = vmax.xlane.f32.xlu0 %v941
        %v943 = vpop.xlane.xlu0 %942
        %v944 = vmax.f32 %v704, %v817
        %945 = vmax.xlane.f32.xlu0 %v944
        %v946 = vpop.xlane.xlu0 %945
        %v947 = vmax.f32 %v707, %v820
        %948 = vmax.xlane.f32.xlu0 %v947
        %v949 = vpop.xlane.xlu0 %948
        %v950 = vmax.f32 %v822, %v856
        %v951 = vmax.f32 %v823, %v859
        %v952 = vmax.f32 %v824, %v862
        %v953 = vmax.f32 %v825, %v865
        %v954 = vmax.f32 %v826, %v868
        %v955 = vmax.f32 %v827, %v871
        %v956 = vmax.f32 %v828, %v874
        %v957 = vmax.f32 %v829, %v877
        %v958 = vmax.f32 %v830, %v880
        %v959 = vmax.f32 %v831, %v883
        %v960 = vmax.f32 %v832, %v886
        %v961 = vmax.f32 %v833, %v889
        %v962 = vmax.f32 %v834, %v892
        %v963 = vmax.f32 %v835, %v895
        %v964 = vmax.f32 %v836, %v898
        %v965 = vmax.f32 %v837, %v901
        %v966 = vmax.f32 %v838, %v904
        %v967 = vmax.f32 %v839, %v907
        %v968 = vmax.f32 %v840, %v910
        %v969 = vmax.f32 %v841, %v913
        %v970 = vmax.f32 %v842, %v916
        %v971 = vmax.f32 %v843, %v919
        %v972 = vmax.f32 %v844, %v922
        %v973 = vmax.f32 %v845, %v925
        %v974 = vmax.f32 %v846, %v928
        %v975 = vmax.f32 %v847, %v931
        %v976 = vmax.f32 %v848, %v934
        %v977 = vmax.f32 %v849, %v937
        %v978 = vmax.f32 %v850, %v940
        %v979 = vmax.f32 %v851, %v943
        %v980 = vmax.f32 %v852, %v946
        %v981 = vmax.f32 %v853, %v949
        %v982 = vsub.f32 %v822, %v950
        %v983 = vsub.f32 %v823, %v951
        %v984 = vsub.f32 %v824, %v952
        %v985 = vsub.f32 %v825, %v953
        %v986 = vsub.f32 %v826, %v954
        %v987 = vsub.f32 %v827, %v955
        %v988 = vsub.f32 %v828, %v956
        %v989 = vsub.f32 %v829, %v957
        %v990 = vsub.f32 %v830, %v958
        %v991 = vsub.f32 %v831, %v959
        %v992 = vsub.f32 %v832, %v960
        %v993 = vsub.f32 %v833, %v961
        %v994 = vsub.f32 %v834, %v962
        %v995 = vsub.f32 %v835, %v963
        %v996 = vsub.f32 %v836, %v964
        %v997 = vsub.f32 %v837, %v965
        %v998 = vsub.f32 %v838, %v966
        %v999 = vsub.f32 %v839, %v967
        %v1000 = vsub.f32 %v840, %v968
        %v1001 = vsub.f32 %v841, %v969
        %v1002 = vsub.f32 %v842, %v970
        %v1003 = vsub.f32 %v843, %v971
        %v1004 = vsub.f32 %v844, %v972
        %v1005 = vsub.f32 %v845, %v973
        %v1006 = vsub.f32 %v846, %v974
        %v1007 = vsub.f32 %v847, %v975
        %v1008 = vsub.f32 %v848, %v976
        %v1009 = vsub.f32 %v849, %v977
        %v1010 = vsub.f32 %v850, %v978
        %v1011 = vsub.f32 %v851, %v979
        %v1012 = vsub.f32 %v852, %v980
        %v1013 = vsub.f32 %v853, %v981
        %v1014 = vmul.f32 %v982, 1.442695
        %v1015 = vpow.pop %v1014
        %v1016 = vmul.f32 %v983, 1.442695
        %v1017 = vpow.pop %v1016
        %v1018 = vmul.f32 %v984, 1.442695
        %v1019 = vpow.pop %v1018
        %v1020 = vmul.f32 %v985, 1.442695
        %v1021 = vpow.pop %v1020
        %v1022 = vmul.f32 %v986, 1.442695
        %v1023 = vpow.pop %v1022
        %v1024 = vmul.f32 %v987, 1.442695
        %v1025 = vpow.pop %v1024
        %v1026 = vmul.f32 %v988, 1.442695
        %v1027 = vpow.pop %v1026
        %v1028 = vmul.f32 %v989, 1.442695
        %v1029 = vpow.pop %v1028
        %v1030 = vmul.f32 %v990, 1.442695
        %v1031 = vpow.pop %v1030
        %v1032 = vmul.f32 %v991, 1.442695
        %v1033 = vpow.pop %v1032
        %v1034 = vmul.f32 %v992, 1.442695
        %v1035 = vpow.pop %v1034
        %v1036 = vmul.f32 %v993, 1.442695
        %v1037 = vpow.pop %v1036
        %v1038 = vmul.f32 %v994, 1.442695
        %v1039 = vpow.pop %v1038
        %v1040 = vmul.f32 %v995, 1.442695
        %v1041 = vpow.pop %v1040
        %v1042 = vmul.f32 %v996, 1.442695
        %v1043 = vpow.pop %v1042
        %v1044 = vmul.f32 %v997, 1.442695
        %v1045 = vpow.pop %v1044
        %v1046 = vmul.f32 %v998, 1.442695
        %v1047 = vpow.pop %v1046
        %v1048 = vmul.f32 %v999, 1.442695
        %v1049 = vpow.pop %v1048
        %v1050 = vmul.f32 %v1000, 1.442695
        %v1051 = vpow.pop %v1050
        %v1052 = vmul.f32 %v1001, 1.442695
        %v1053 = vpow.pop %v1052
        %v1054 = vmul.f32 %v1002, 1.442695
        %v1055 = vpow.pop %v1054
        %v1056 = vmul.f32 %v1003, 1.442695
        %v1057 = vpow.pop %v1056
        %v1058 = vmul.f32 %v1004, 1.442695
        %v1059 = vpow.pop %v1058
        %v1060 = vmul.f32 %v1005, 1.442695
        %v1061 = vpow.pop %v1060
        %v1062 = vmul.f32 %v1006, 1.442695
        %v1063 = vpow.pop %v1062
        %v1064 = vmul.f32 %v1007, 1.442695
        %v1065 = vpow.pop %v1064
        %v1066 = vmul.f32 %v1008, 1.442695
        %v1067 = vpow.pop %v1066
        %v1068 = vmul.f32 %v1009, 1.442695
        %v1069 = vpow.pop %v1068
        %v1070 = vmul.f32 %v1010, 1.442695
        %v1071 = vpow.pop %v1070
        %v1072 = vmul.f32 %v1011, 1.442695
        %v1073 = vpow.pop %v1072
        %v1074 = vmul.f32 %v1012, 1.442695
        %v1075 = vpow.pop %v1074
        %v1076 = vmul.f32 %v1013, 1.442695
        %v1077 = vpow.pop %v1076
        %1079 = vset.pattern.permute.xlu0 0
        %1080 = vperm.xlu0 %1079, %v950
        %v1081 = vpop.permute.xlu0 %1080
        %1084 = vset.pattern.permute.xlu0 0
        %1085 = vperm.xlu0 %1084, %v951
        %v1086 = vpop.permute.xlu0 %1085
        %1089 = vset.pattern.permute.xlu0 0
        %1090 = vperm.xlu0 %1089, %v952
        %v1091 = vpop.permute.xlu0 %1090
        %1094 = vset.pattern.permute.xlu0 0
        %1095 = vperm.xlu0 %1094, %v953
        %v1096 = vpop.permute.xlu0 %1095
        %1099 = vset.pattern.permute.xlu0 0
        %1100 = vperm.xlu0 %1099, %v954
        %v1101 = vpop.permute.xlu0 %1100
        %1104 = vset.pattern.permute.xlu0 0
        %1105 = vperm.xlu0 %1104, %v955
        %v1106 = vpop.permute.xlu0 %1105
        %1109 = vset.pattern.permute.xlu0 0
        %1110 = vperm.xlu0 %1109, %v956
        %v1111 = vpop.permute.xlu0 %1110
        %1114 = vset.pattern.permute.xlu0 0
        %1115 = vperm.xlu0 %1114, %v957
        %v1116 = vpop.permute.xlu0 %1115
        %1119 = vset.pattern.permute.xlu0 0
        %1120 = vperm.xlu0 %1119, %v958
        %v1121 = vpop.permute.xlu0 %1120
        %1124 = vset.pattern.permute.xlu0 0
        %1125 = vperm.xlu0 %1124, %v959
        %v1126 = vpop.permute.xlu0 %1125
        %1129 = vset.pattern.permute.xlu0 0
        %1130 = vperm.xlu0 %1129, %v960
        %v1131 = vpop.permute.xlu0 %1130
        %1134 = vset.pattern.permute.xlu0 0
        %1135 = vperm.xlu0 %1134, %v961
        %v1136 = vpop.permute.xlu0 %1135
        %1139 = vset.pattern.permute.xlu0 0
        %1140 = vperm.xlu0 %1139, %v962
        %v1141 = vpop.permute.xlu0 %1140
        %1144 = vset.pattern.permute.xlu0 0
        %1145 = vperm.xlu0 %1144, %v963
        %v1146 = vpop.permute.xlu0 %1145
        %1149 = vset.pattern.permute.xlu0 0
        %1150 = vperm.xlu0 %1149, %v964
        %v1151 = vpop.permute.xlu0 %1150
        %1154 = vset.pattern.permute.xlu0 0
        %1155 = vperm.xlu0 %1154, %v965
        %v1156 = vpop.permute.xlu0 %1155
        %1159 = vset.pattern.permute.xlu0 0
        %1160 = vperm.xlu0 %1159, %v966
        %v1161 = vpop.permute.xlu0 %1160
        %1164 = vset.pattern.permute.xlu0 0
        %1165 = vperm.xlu0 %1164, %v967
        %v1166 = vpop.permute.xlu0 %1165
        %1169 = vset.pattern.permute.xlu0 0
        %1170 = vperm.xlu0 %1169, %v968
        %v1171 = vpop.permute.xlu0 %1170
        %1174 = vset.pattern.permute.xlu0 0
        %1175 = vperm.xlu0 %1174, %v969
        %v1176 = vpop.permute.xlu0 %1175
        %1179 = vset.pattern.permute.xlu0 0
        %1180 = vperm.xlu0 %1179, %v970
        %v1181 = vpop.permute.xlu0 %1180
        %1184 = vset.pattern.permute.xlu0 0
        %1185 = vperm.xlu0 %1184, %v971
        %v1186 = vpop.permute.xlu0 %1185
        %1189 = vset.pattern.permute.xlu0 0
        %1190 = vperm.xlu0 %1189, %v972
        %v1191 = vpop.permute.xlu0 %1190
        %1194 = vset.pattern.permute.xlu0 0
        %1195 = vperm.xlu0 %1194, %v973
        %v1196 = vpop.permute.xlu0 %1195
        %1199 = vset.pattern.permute.xlu0 0
        %1200 = vperm.xlu0 %1199, %v974
        %v1201 = vpop.permute.xlu0 %1200
        %1204 = vset.pattern.permute.xlu0 0
        %1205 = vperm.xlu0 %1204, %v975
        %v1206 = vpop.permute.xlu0 %1205
        %1209 = vset.pattern.permute.xlu0 0
        %1210 = vperm.xlu0 %1209, %v976
        %v1211 = vpop.permute.xlu0 %1210
        %1214 = vset.pattern.permute.xlu0 0
        %1215 = vperm.xlu0 %1214, %v977
        %v1216 = vpop.permute.xlu0 %1215
        %1219 = vset.pattern.permute.xlu0 0
        %1220 = vperm.xlu0 %1219, %v978
        %v1221 = vpop.permute.xlu0 %1220
        %1224 = vset.pattern.permute.xlu0 0
        %1225 = vperm.xlu0 %1224, %v979
        %v1226 = vpop.permute.xlu0 %1225
        %1229 = vset.pattern.permute.xlu0 0
        %1230 = vperm.xlu0 %1229, %v980
        %v1231 = vpop.permute.xlu0 %1230
        %1234 = vset.pattern.permute.xlu0 0
        %1235 = vperm.xlu0 %1234, %v981
        %v1236 = vpop.permute.xlu0 %1235
        %v1238 = vsub.f32 %v614, %v1081
        %v1239 = vsub.f32 %v727, %v1081
        %v1240 = vsub.f32 %v617, %v1086
        %v1241 = vsub.f32 %v730, %v1086
        %v1242 = vsub.f32 %v620, %v1091
        %v1243 = vsub.f32 %v733, %v1091
        %v1244 = vsub.f32 %v623, %v1096
        %v1245 = vsub.f32 %v736, %v1096
        %v1246 = vsub.f32 %v626, %v1101
        %v1247 = vsub.f32 %v739, %v1101
        %v1248 = vsub.f32 %v629, %v1106
        %v1249 = vsub.f32 %v742, %v1106
        %v1250 = vsub.f32 %v632, %v1111
        %v1251 = vsub.f32 %v745, %v1111
        %v1252 = vsub.f32 %v635, %v1116
        %v1253 = vsub.f32 %v748, %v1116
        %v1254 = vsub.f32 %v638, %v1121
        %v1255 = vsub.f32 %v751, %v1121
        %v1256 = vsub.f32 %v641, %v1126
        %v1257 = vsub.f32 %v754, %v1126
        %v1258 = vsub.f32 %v644, %v1131
        %v1259 = vsub.f32 %v757, %v1131
        %v1260 = vsub.f32 %v647, %v1136
        %v1261 = vsub.f32 %v760, %v1136
        %v1262 = vsub.f32 %v650, %v1141
        %v1263 = vsub.f32 %v763, %v1141
        %v1264 = vsub.f32 %v653, %v1146
        %v1265 = vsub.f32 %v766, %v1146
        %v1266 = vsub.f32 %v656, %v1151
        %v1267 = vsub.f32 %v769, %v1151
        %v1268 = vsub.f32 %v659, %v1156
        %v1269 = vsub.f32 %v772, %v1156
        %v1270 = vsub.f32 %v662, %v1161
        %v1271 = vsub.f32 %v775, %v1161
        %v1272 = vsub.f32 %v665, %v1166
        %v1273 = vsub.f32 %v778, %v1166
        %v1274 = vsub.f32 %v668, %v1171
        %v1275 = vsub.f32 %v781, %v1171
        %v1276 = vsub.f32 %v671, %v1176
        %v1277 = vsub.f32 %v784, %v1176
        %v1278 = vsub.f32 %v674, %v1181
        %v1279 = vsub.f32 %v787, %v1181
        %v1280 = vsub.f32 %v677, %v1186
        %v1281 = vsub.f32 %v790, %v1186
        %v1282 = vsub.f32 %v680, %v1191
        %v1283 = vsub.f32 %v793, %v1191
        %v1284 = vsub.f32 %v683, %v1196
        %v1285 = vsub.f32 %v796, %v1196
        %v1286 = vsub.f32 %v686, %v1201
        %v1287 = vsub.f32 %v799, %v1201
        %v1288 = vsub.f32 %v689, %v1206
        %v1289 = vsub.f32 %v802, %v1206
        %v1290 = vsub.f32 %v692, %v1211
        %v1291 = vsub.f32 %v805, %v1211
        %v1292 = vsub.f32 %v695, %v1216
        %v1293 = vsub.f32 %v808, %v1216
        %v1294 = vsub.f32 %v698, %v1221
        %v1295 = vsub.f32 %v811, %v1221
        %v1296 = vsub.f32 %v701, %v1226
        %v1297 = vsub.f32 %v814, %v1226
        %v1298 = vsub.f32 %v704, %v1231
        %v1299 = vsub.f32 %v817, %v1231
        %v1300 = vsub.f32 %v707, %v1236
        %v1301 = vsub.f32 %v820, %v1236
        %v1302 = vmul.f32 %v1238, 1.442695
        %v1303 = vpow.pop %v1302
        %v1304 = vmul.f32 %v1239, 1.442695
        %v1305 = vpow.pop %v1304
        %v1306 = vmul.f32 %v1240, 1.442695
        %v1307 = vpow.pop %v1306
        %v1308 = vmul.f32 %v1241, 1.442695
        %v1309 = vpow.pop %v1308
        %v1310 = vmul.f32 %v1242, 1.442695
        %v1311 = vpow.pop %v1310
        %v1312 = vmul.f32 %v1243, 1.442695
        %v1313 = vpow.pop %v1312
        %v1314 = vmul.f32 %v1244, 1.442695
        %v1315 = vpow.pop %v1314
        %v1316 = vmul.f32 %v1245, 1.442695
        %v1317 = vpow.pop %v1316
        %v1318 = vmul.f32 %v1246, 1.442695
        %v1319 = vpow.pop %v1318
        %v1320 = vmul.f32 %v1247, 1.442695
        %v1321 = vpow.pop %v1320
        %v1322 = vmul.f32 %v1248, 1.442695
        %v1323 = vpow.pop %v1322
        %v1324 = vmul.f32 %v1249, 1.442695
        %v1325 = vpow.pop %v1324
        %v1326 = vmul.f32 %v1250, 1.442695
        %v1327 = vpow.pop %v1326
        %v1328 = vmul.f32 %v1251, 1.442695
        %v1329 = vpow.pop %v1328
        %v1330 = vmul.f32 %v1252, 1.442695
        %v1331 = vpow.pop %v1330
        %v1332 = vmul.f32 %v1253, 1.442695
        %v1333 = vpow.pop %v1332
        %v1334 = vmul.f32 %v1254, 1.442695
        %v1335 = vpow.pop %v1334
        %v1336 = vmul.f32 %v1255, 1.442695
        %v1337 = vpow.pop %v1336
        %v1338 = vmul.f32 %v1256, 1.442695
        %v1339 = vpow.pop %v1338
        %v1340 = vmul.f32 %v1257, 1.442695
        %v1341 = vpow.pop %v1340
        %v1342 = vmul.f32 %v1258, 1.442695
        %v1343 = vpow.pop %v1342
        %v1344 = vmul.f32 %v1259, 1.442695
        %v1345 = vpow.pop %v1344
        %v1346 = vmul.f32 %v1260, 1.442695
        %v1347 = vpow.pop %v1346
        %v1348 = vmul.f32 %v1261, 1.442695
        %v1349 = vpow.pop %v1348
        %v1350 = vmul.f32 %v1262, 1.442695
        %v1351 = vpow.pop %v1350
        %v1352 = vmul.f32 %v1263, 1.442695
        %v1353 = vpow.pop %v1352
        %v1354 = vmul.f32 %v1264, 1.442695
        %v1355 = vpow.pop %v1354
        %v1356 = vmul.f32 %v1265, 1.442695
        %v1357 = vpow.pop %v1356
        %v1358 = vmul.f32 %v1266, 1.442695
        %v1359 = vpow.pop %v1358
        %v1360 = vmul.f32 %v1267, 1.442695
        %v1361 = vpow.pop %v1360
        %v1362 = vmul.f32 %v1268, 1.442695
        %v1363 = vpow.pop %v1362
        %v1364 = vmul.f32 %v1269, 1.442695
        %v1365 = vpow.pop %v1364
        %v1366 = vmul.f32 %v1270, 1.442695
        %v1367 = vpow.pop %v1366
        %v1368 = vmul.f32 %v1271, 1.442695
        %v1369 = vpow.pop %v1368
        %v1370 = vmul.f32 %v1272, 1.442695
        %v1371 = vpow.pop %v1370
        %v1372 = vmul.f32 %v1273, 1.442695
        %v1373 = vpow.pop %v1372
        %v1374 = vmul.f32 %v1274, 1.442695
        %v1375 = vpow.pop %v1374
        %v1376 = vmul.f32 %v1275, 1.442695
        %v1377 = vpow.pop %v1376
        %v1378 = vmul.f32 %v1276, 1.442695
        %v1379 = vpow.pop %v1378
        %v1380 = vmul.f32 %v1277, 1.442695
        %v1381 = vpow.pop %v1380
        %v1382 = vmul.f32 %v1278, 1.442695
        %v1383 = vpow.pop %v1382
        %v1384 = vmul.f32 %v1279, 1.442695
        %v1385 = vpow.pop %v1384
        %v1386 = vmul.f32 %v1280, 1.442695
        %v1387 = vpow.pop %v1386
        %v1388 = vmul.f32 %v1281, 1.442695
        %v1389 = vpow.pop %v1388
        %v1390 = vmul.f32 %v1282, 1.442695
        %v1391 = vpow.pop %v1390
        %v1392 = vmul.f32 %v1283, 1.442695
        %v1393 = vpow.pop %v1392
        %v1394 = vmul.f32 %v1284, 1.442695
        %v1395 = vpow.pop %v1394
        %v1396 = vmul.f32 %v1285, 1.442695
        %v1397 = vpow.pop %v1396
        %v1398 = vmul.f32 %v1286, 1.442695
        %v1399 = vpow.pop %v1398
        %v1400 = vmul.f32 %v1287, 1.442695
        %v1401 = vpow.pop %v1400
        %v1402 = vmul.f32 %v1288, 1.442695
        %v1403 = vpow.pop %v1402
        %v1404 = vmul.f32 %v1289, 1.442695
        %v1405 = vpow.pop %v1404
        %v1406 = vmul.f32 %v1290, 1.442695
        %v1407 = vpow.pop %v1406
        %v1408 = vmul.f32 %v1291, 1.442695
        %v1409 = vpow.pop %v1408
        %v1410 = vmul.f32 %v1292, 1.442695
        %v1411 = vpow.pop %v1410
        %v1412 = vmul.f32 %v1293, 1.442695
        %v1413 = vpow.pop %v1412
        %v1414 = vmul.f32 %v1294, 1.442695
        %v1415 = vpow.pop %v1414
        %v1416 = vmul.f32 %v1295, 1.442695
        %v1417 = vpow.pop %v1416
        %v1418 = vmul.f32 %v1296, 1.442695
        %v1419 = vpow.pop %v1418
        %v1420 = vmul.f32 %v1297, 1.442695
        %v1421 = vpow.pop %v1420
        %v1422 = vmul.f32 %v1298, 1.442695
        %v1423 = vpow.pop %v1422
        %v1424 = vmul.f32 %v1299, 1.442695
        %v1425 = vpow.pop %v1424
        %v1426 = vmul.f32 %v1300, 1.442695
        %v1427 = vpow.pop %v1426
        %v1428 = vmul.f32 %v1301, 1.442695
        %v1429 = vpow.pop %v1428
        %v1430 = vld [vmem:[#allocation3] sm:$0xff]
        %v1431 = vld [vmem:[#allocation3 + $0x8] sm:$0xff]
        %v1432 = vld [vmem:[#allocation3 + $0x10] sm:$0xff]
        %v1433 = vld [vmem:[#allocation3 + $0x18] sm:$0xff]
        %v1434 = vld [vmem:[#allocation3 + $0x20] sm:$0xff]
        %v1435 = vld [vmem:[#allocation3 + $0x28] sm:$0xff]
        %v1436 = vld [vmem:[#allocation3 + $0x30] sm:$0xff]
        %v1437 = vld [vmem:[#allocation3 + $0x38] sm:$0xff]
        %v1438 = vld [vmem:[#allocation3 + $0x40] sm:$0xff]
        %v1439 = vld [vmem:[#allocation3 + $0x48] sm:$0xff]
        %v1440 = vld [vmem:[#allocation3 + $0x50] sm:$0xff]
        %v1441 = vld [vmem:[#allocation3 + $0x58] sm:$0xff]
        %v1442 = vld [vmem:[#allocation3 + $0x60] sm:$0xff]
        %v1443 = vld [vmem:[#allocation3 + $0x68] sm:$0xff]
        %v1444 = vld [vmem:[#allocation3 + $0x70] sm:$0xff]
        %v1445 = vld [vmem:[#allocation3 + $0x78] sm:$0xff]
        %v1446 = vld [vmem:[#allocation3 + $0x80] sm:$0xff]
        %v1447 = vld [vmem:[#allocation3 + $0x88] sm:$0xff]
        %v1448 = vld [vmem:[#allocation3 + $0x90] sm:$0xff]
        %v1449 = vld [vmem:[#allocation3 + $0x98] sm:$0xff]
        %v1450 = vld [vmem:[#allocation3 + $0xa0] sm:$0xff]
        %v1451 = vld [vmem:[#allocation3 + $0xa8] sm:$0xff]
        %v1452 = vld [vmem:[#allocation3 + $0xb0] sm:$0xff]
        %v1453 = vld [vmem:[#allocation3 + $0xb8] sm:$0xff]
        %v1454 = vld [vmem:[#allocation3 + $0xc0] sm:$0xff]
        %v1455 = vld [vmem:[#allocation3 + $0xc8] sm:$0xff]
        %v1456 = vld [vmem:[#allocation3 + $0xd0] sm:$0xff]
        %v1457 = vld [vmem:[#allocation3 + $0xd8] sm:$0xff]
        %v1458 = vld [vmem:[#allocation3 + $0xe0] sm:$0xff]
        %v1459 = vld [vmem:[#allocation3 + $0xe8] sm:$0xff]
        %v1460 = vld [vmem:[#allocation3 + $0xf0] sm:$0xff]
        %v1461 = vld [vmem:[#allocation3 + $0xf8] sm:$0xff]
        %v1462 = vmul.f32 %v1015, %v1430
        %v1463 = vmul.f32 %v1017, %v1431
        %v1464 = vmul.f32 %v1019, %v1432
        %v1465 = vmul.f32 %v1021, %v1433
        %v1466 = vmul.f32 %v1023, %v1434
        %v1467 = vmul.f32 %v1025, %v1435
        %v1468 = vmul.f32 %v1027, %v1436
        %v1469 = vmul.f32 %v1029, %v1437
        %v1470 = vmul.f32 %v1031, %v1438
        %v1471 = vmul.f32 %v1033, %v1439
        %v1472 = vmul.f32 %v1035, %v1440
        %v1473 = vmul.f32 %v1037, %v1441
        %v1474 = vmul.f32 %v1039, %v1442
        %v1475 = vmul.f32 %v1041, %v1443
        %v1476 = vmul.f32 %v1043, %v1444
        %v1477 = vmul.f32 %v1045, %v1445
        %v1478 = vmul.f32 %v1047, %v1446
        %v1479 = vmul.f32 %v1049, %v1447
        %v1480 = vmul.f32 %v1051, %v1448
        %v1481 = vmul.f32 %v1053, %v1449
        %v1482 = vmul.f32 %v1055, %v1450
        %v1483 = vmul.f32 %v1057, %v1451
        %v1484 = vmul.f32 %v1059, %v1452
        %v1485 = vmul.f32 %v1061, %v1453
        %v1486 = vmul.f32 %v1063, %v1454
        %v1487 = vmul.f32 %v1065, %v1455
        %v1488 = vmul.f32 %v1067, %v1456
        %v1489 = vmul.f32 %v1069, %v1457
        %v1490 = vmul.f32 %v1071, %v1458
        %v1491 = vmul.f32 %v1073, %v1459
        %v1492 = vmul.f32 %v1075, %v1460
        %v1493 = vmul.f32 %v1077, %v1461
        %v1494 = vadd.f32 %v1303, %v1305
        %1495 = vadd.xlane.f32.xlu0 %v1494
        %v1496 = vpop.xlane.xlu0 %1495
        %v1497 = vadd.f32 %v1307, %v1309
        %1498 = vadd.xlane.f32.xlu0 %v1497
        %v1499 = vpop.xlane.xlu0 %1498
        %v1500 = vadd.f32 %v1311, %v1313
        %1501 = vadd.xlane.f32.xlu0 %v1500
        %v1502 = vpop.xlane.xlu0 %1501
        %v1503 = vadd.f32 %v1315, %v1317
        %1504 = vadd.xlane.f32.xlu0 %v1503
        %v1505 = vpop.xlane.xlu0 %1504
        %v1506 = vadd.f32 %v1319, %v1321
        %1507 = vadd.xlane.f32.xlu0 %v1506
        %v1508 = vpop.xlane.xlu0 %1507
        %v1509 = vadd.f32 %v1323, %v1325
        %1510 = vadd.xlane.f32.xlu0 %v1509
        %v1511 = vpop.xlane.xlu0 %1510
        %v1512 = vadd.f32 %v1327, %v1329
        %1513 = vadd.xlane.f32.xlu0 %v1512
        %v1514 = vpop.xlane.xlu0 %1513
        %v1515 = vadd.f32 %v1331, %v1333
        %1516 = vadd.xlane.f32.xlu0 %v1515
        %v1517 = vpop.xlane.xlu0 %1516
        %v1518 = vadd.f32 %v1335, %v1337
        %1519 = vadd.xlane.f32.xlu0 %v1518
        %v1520 = vpop.xlane.xlu0 %1519
        %v1521 = vadd.f32 %v1339, %v1341
        %1522 = vadd.xlane.f32.xlu0 %v1521
        %v1523 = vpop.xlane.xlu0 %1522
        %v1524 = vadd.f32 %v1343, %v1345
        %1525 = vadd.xlane.f32.xlu0 %v1524
        %v1526 = vpop.xlane.xlu0 %1525
        %v1527 = vadd.f32 %v1347, %v1349
        %1528 = vadd.xlane.f32.xlu0 %v1527
        %v1529 = vpop.xlane.xlu0 %1528
        %v1530 = vadd.f32 %v1351, %v1353
        %1531 = vadd.xlane.f32.xlu0 %v1530
        %v1532 = vpop.xlane.xlu0 %1531
        %v1533 = vadd.f32 %v1355, %v1357
        %1534 = vadd.xlane.f32.xlu0 %v1533
        %v1535 = vpop.xlane.xlu0 %1534
        %v1536 = vadd.f32 %v1359, %v1361
        %1537 = vadd.xlane.f32.xlu0 %v1536
        %v1538 = vpop.xlane.xlu0 %1537
        %v1539 = vadd.f32 %v1363, %v1365
        %1540 = vadd.xlane.f32.xlu0 %v1539
        %v1541 = vpop.xlane.xlu0 %1540
        %v1542 = vadd.f32 %v1367, %v1369
        %1543 = vadd.xlane.f32.xlu0 %v1542
        %v1544 = vpop.xlane.xlu0 %1543
        %v1545 = vadd.f32 %v1371, %v1373
        %1546 = vadd.xlane.f32.xlu0 %v1545
        %v1547 = vpop.xlane.xlu0 %1546
        %v1548 = vadd.f32 %v1375, %v1377
        %1549 = vadd.xlane.f32.xlu0 %v1548
        %v1550 = vpop.xlane.xlu0 %1549
        %v1551 = vadd.f32 %v1379, %v1381
        %1552 = vadd.xlane.f32.xlu0 %v1551
        %v1553 = vpop.xlane.xlu0 %1552
        %v1554 = vadd.f32 %v1383, %v1385
        %1555 = vadd.xlane.f32.xlu0 %v1554
        %v1556 = vpop.xlane.xlu0 %1555
        %v1557 = vadd.f32 %v1387, %v1389
        %1558 = vadd.xlane.f32.xlu0 %v1557
        %v1559 = vpop.xlane.xlu0 %1558
        %v1560 = vadd.f32 %v1391, %v1393
        %1561 = vadd.xlane.f32.xlu0 %v1560
        %v1562 = vpop.xlane.xlu0 %1561
        %v1563 = vadd.f32 %v1395, %v1397
        %1564 = vadd.xlane.f32.xlu0 %v1563
        %v1565 = vpop.xlane.xlu0 %1564
        %v1566 = vadd.f32 %v1399, %v1401
        %1567 = vadd.xlane.f32.xlu0 %v1566
        %v1568 = vpop.xlane.xlu0 %1567
        %v1569 = vadd.f32 %v1403, %v1405
        %1570 = vadd.xlane.f32.xlu0 %v1569
        %v1571 = vpop.xlane.xlu0 %1570
        %v1572 = vadd.f32 %v1407, %v1409
        %1573 = vadd.xlane.f32.xlu0 %v1572
        %v1574 = vpop.xlane.xlu0 %1573
        %v1575 = vadd.f32 %v1411, %v1413
        %1576 = vadd.xlane.f32.xlu0 %v1575
        %v1577 = vpop.xlane.xlu0 %1576
        %v1578 = vadd.f32 %v1415, %v1417
        %1579 = vadd.xlane.f32.xlu0 %v1578
        %v1580 = vpop.xlane.xlu0 %1579
        %v1581 = vadd.f32 %v1419, %v1421
        %1582 = vadd.xlane.f32.xlu0 %v1581
        %v1583 = vpop.xlane.xlu0 %1582
        %v1584 = vadd.f32 %v1423, %v1425
        %1585 = vadd.xlane.f32.xlu0 %v1584
        %v1586 = vpop.xlane.xlu0 %1585
        %v1587 = vadd.f32 %v1427, %v1429
        %1588 = vadd.xlane.f32.xlu0 %v1587
        %v1589 = vpop.xlane.xlu0 %1588
        %v1590 = vadd.f32 %v1462, %v1496
        %v1591 = vadd.f32 %v1463, %v1499
        %v1592 = vadd.f32 %v1464, %v1502
        %v1593 = vadd.f32 %v1465, %v1505
        %v1594 = vadd.f32 %v1466, %v1508
        %v1595 = vadd.f32 %v1467, %v1511
        %v1596 = vadd.f32 %v1468, %v1514
        %v1597 = vadd.f32 %v1469, %v1517
        %v1598 = vadd.f32 %v1470, %v1520
        %v1599 = vadd.f32 %v1471, %v1523
        %v1600 = vadd.f32 %v1472, %v1526
        %v1601 = vadd.f32 %v1473, %v1529
        %v1602 = vadd.f32 %v1474, %v1532
        %v1603 = vadd.f32 %v1475, %v1535
        %v1604 = vadd.f32 %v1476, %v1538
        %v1605 = vadd.f32 %v1477, %v1541
        %v1606 = vadd.f32 %v1478, %v1544
        %v1607 = vadd.f32 %v1479, %v1547
        %v1608 = vadd.f32 %v1480, %v1550
        %v1609 = vadd.f32 %v1481, %v1553
        %v1610 = vadd.f32 %v1482, %v1556
        %v1611 = vadd.f32 %v1483, %v1559
        %v1612 = vadd.f32 %v1484, %v1562
        %v1613 = vadd.f32 %v1485, %v1565
        %v1614 = vadd.f32 %v1486, %v1568
        %v1615 = vadd.f32 %v1487, %v1571
        %v1616 = vadd.f32 %v1488, %v1574
        %v1617 = vadd.f32 %v1489, %v1577
        %v1618 = vadd.f32 %v1490, %v1580
        %v1619 = vadd.f32 %v1491, %v1583
        %v1620 = vadd.f32 %v1492, %v1586
        %v1621 = vadd.f32 %v1493, %v1589
        %vm1622 = vcmask 7168
        %1623 = vst.msk [vmem:[#allocation3] sm:$0xff] %vm1622, %v1590
        %1624 = vst.msk [vmem:[#allocation3 + $0x8] sm:$0xff] %vm1622, %v1591
        %1625 = vst.msk [vmem:[#allocation3 + $0x10] sm:$0xff] %vm1622, %v1592
        %1626 = vst.msk [vmem:[#allocation3 + $0x18] sm:$0xff] %vm1622, %v1593
        %1627 = vst.msk [vmem:[#allocation3 + $0x20] sm:$0xff] %vm1622, %v1594
        %1628 = vst.msk [vmem:[#allocation3 + $0x28] sm:$0xff] %vm1622, %v1595
        %1629 = vst.msk [vmem:[#allocation3 + $0x30] sm:$0xff] %vm1622, %v1596
        %1630 = vst.msk [vmem:[#allocation3 + $0x38] sm:$0xff] %vm1622, %v1597
        %1631 = vst.msk [vmem:[#allocation3 + $0x40] sm:$0xff] %vm1622, %v1598
        %1632 = vst.msk [vmem:[#allocation3 + $0x48] sm:$0xff] %vm1622, %v1599
        %1633 = vst.msk [vmem:[#allocation3 + $0x50] sm:$0xff] %vm1622, %v1600
        %1634 = vst.msk [vmem:[#allocation3 + $0x58] sm:$0xff] %vm1622, %v1601
        %1635 = vst.msk [vmem:[#allocation3 + $0x60] sm:$0xff] %vm1622, %v1602
        %1636 = vst.msk [vmem:[#allocation3 + $0x68] sm:$0xff] %vm1622, %v1603
        %1637 = vst.msk [vmem:[#allocation3 + $0x70] sm:$0xff] %vm1622, %v1604
        %1638 = vst.msk [vmem:[#allocation3 + $0x78] sm:$0xff] %vm1622, %v1605
        %1639 = vst.msk [vmem:[#allocation3 + $0x80] sm:$0xff] %vm1622, %v1606
        %1640 = vst.msk [vmem:[#allocation3 + $0x88] sm:$0xff] %vm1622, %v1607
        %1641 = vst.msk [vmem:[#allocation3 + $0x90] sm:$0xff] %vm1622, %v1608
        %1642 = vst.msk [vmem:[#allocation3 + $0x98] sm:$0xff] %vm1622, %v1609
        %1643 = vst.msk [vmem:[#allocation3 + $0xa0] sm:$0xff] %vm1622, %v1610
        %1644 = vst.msk [vmem:[#allocation3 + $0xa8] sm:$0xff] %vm1622, %v1611
        %1645 = vst.msk [vmem:[#allocation3 + $0xb0] sm:$0xff] %vm1622, %v1612
        %1646 = vst.msk [vmem:[#allocation3 + $0xb8] sm:$0xff] %vm1622, %v1613
        %1647 = vst.msk [vmem:[#allocation3 + $0xc0] sm:$0xff] %vm1622, %v1614
        %1648 = vst.msk [vmem:[#allocation3 + $0xc8] sm:$0xff] %vm1622, %v1615
        %1649 = vst.msk [vmem:[#allocation3 + $0xd0] sm:$0xff] %vm1622, %v1616
        %1650 = vst.msk [vmem:[#allocation3 + $0xd8] sm:$0xff] %vm1622, %v1617
        %1651 = vst.msk [vmem:[#allocation3 + $0xe0] sm:$0xff] %vm1622, %v1618
        %1652 = vst.msk [vmem:[#allocation3 + $0xe8] sm:$0xff] %vm1622, %v1619
        %1653 = vst.msk [vmem:[#allocation3 + $0xf0] sm:$0xff] %vm1622, %v1620
        %1654 = vst.msk [vmem:[#allocation3 + $0xf8] sm:$0xff] %vm1622, %v1621
        %1655 = vmatpush.xpose.msra.mxu0 0.0
        %1656 = vmatpush.xpose.msra.mxu0 0.0
        %1657 = vmatpush.xpose.msra.mxu0 0.0
        %1658 = vmatpush.xpose.msra.mxu0 0.0
        %1659 = vmatpush.xpose.msra.mxu0 0.0
        %1660 = vmatpush.xpose.msra.mxu0 0.0
        %1661 = vmatpush.xpose.msra.mxu0 0.0
        %1662 = vmatpush.xpose.msra.mxu0 0.0
        %1663 = vmatpush.xpose.msra.mxu0 0.0
        %1664 = vmatpush.xpose.msra.mxu0 0.0
        %1665 = vmatpush.xpose.msra.mxu0 0.0
        %1666 = vmatpush.xpose.msra.mxu0 0.0
        %1667 = vmatpush.xpose.msra.mxu0 %v488
        %1668 = vmatpush.xpose.msra.mxu0 %v486
        %1669 = vmatpush.xpose.msra.mxu0 %v484
        %1670 = vmatpush.xpose.msra.mxu0 %v482
        %1671 = vmatmul.f32.gmra.mxu0 %v1303
        %v1672 = vpop.f32.mrf.mxu0
        %v1673 = vadd.f32 0.0, %v1672
        %1674 = vmatmul.f32.gmra.mxu0 %v1307
        %v1675 = vpop.f32.mrf.mxu0
        %v1676 = vadd.f32 0.0, %v1675
        %1677 = vmatmul.f32.gmra.mxu0 %v1311
        %v1678 = vpop.f32.mrf.mxu0
        %v1679 = vadd.f32 0.0, %v1678
        %1680 = vmatmul.f32.gmra.mxu0 %v1315
        %v1681 = vpop.f32.mrf.mxu0
        %v1682 = vadd.f32 0.0, %v1681
        %1683 = vmatmul.f32.gmra.mxu0 %v1319
        %v1684 = vpop.f32.mrf.mxu0
        %v1685 = vadd.f32 0.0, %v1684
        %1686 = vmatmul.f32.gmra.mxu0 %v1323
        %v1687 = vpop.f32.mrf.mxu0
        %v1688 = vadd.f32 0.0, %v1687
        %1689 = vmatmul.f32.gmra.mxu0 %v1327
        %v1690 = vpop.f32.mrf.mxu0
        %v1691 = vadd.f32 0.0, %v1690
        %1692 = vmatmul.f32.gmra.mxu0 %v1331
        %v1693 = vpop.f32.mrf.mxu0
        %v1694 = vadd.f32 0.0, %v1693
        %1695 = vmatmul.f32.gmra.mxu0 %v1335
        %v1696 = vpop.f32.mrf.mxu0
        %v1697 = vadd.f32 0.0, %v1696
        %1698 = vmatmul.f32.gmra.mxu0 %v1339
        %v1699 = vpop.f32.mrf.mxu0
        %v1700 = vadd.f32 0.0, %v1699
        %1701 = vmatmul.f32.gmra.mxu0 %v1343
        %v1702 = vpop.f32.mrf.mxu0
        %v1703 = vadd.f32 0.0, %v1702
        %1704 = vmatmul.f32.gmra.mxu0 %v1347
        %v1705 = vpop.f32.mrf.mxu0
        %v1706 = vadd.f32 0.0, %v1705
        %1707 = vmatmul.f32.gmra.mxu0 %v1351
        %v1708 = vpop.f32.mrf.mxu0
        %v1709 = vadd.f32 0.0, %v1708
        %1710 = vmatmul.f32.gmra.mxu0 %v1355
        %v1711 = vpop.f32.mrf.mxu0
        %v1712 = vadd.f32 0.0, %v1711
        %1713 = vmatmul.f32.gmra.mxu0 %v1359
        %v1714 = vpop.f32.mrf.mxu0
        %v1715 = vadd.f32 0.0, %v1714
        %1716 = vmatmul.f32.gmra.mxu0 %v1363
        %v1717 = vpop.f32.mrf.mxu0
        %v1718 = vadd.f32 0.0, %v1717
        %1719 = vmatmul.f32.gmra.mxu0 %v1367
        %v1720 = vpop.f32.mrf.mxu0
        %v1721 = vadd.f32 0.0, %v1720
        %1722 = vmatmul.f32.gmra.mxu0 %v1371
        %v1723 = vpop.f32.mrf.mxu0
        %v1724 = vadd.f32 0.0, %v1723
        %1725 = vmatmul.f32.gmra.mxu0 %v1375
        %v1726 = vpop.f32.mrf.mxu0
        %v1727 = vadd.f32 0.0, %v1726
        %1728 = vmatmul.f32.gmra.mxu0 %v1379
        %v1729 = vpop.f32.mrf.mxu0
        %v1730 = vadd.f32 0.0, %v1729
        %1731 = vmatmul.f32.gmra.mxu0 %v1383
        %v1732 = vpop.f32.mrf.mxu0
        %v1733 = vadd.f32 0.0, %v1732
        %1734 = vmatmul.f32.gmra.mxu0 %v1387
        %v1735 = vpop.f32.mrf.mxu0
        %v1736 = vadd.f32 0.0, %v1735
        %1737 = vmatmul.f32.gmra.mxu0 %v1391
        %v1738 = vpop.f32.mrf.mxu0
        %v1739 = vadd.f32 0.0, %v1738
        %1740 = vmatmul.f32.gmra.mxu0 %v1395
        %v1741 = vpop.f32.mrf.mxu0
        %v1742 = vadd.f32 0.0, %v1741
        %1743 = vmatmul.f32.gmra.mxu0 %v1399
        %v1744 = vpop.f32.mrf.mxu0
        %v1745 = vadd.f32 0.0, %v1744
        %1746 = vmatmul.f32.gmra.mxu0 %v1403
        %v1747 = vpop.f32.mrf.mxu0
        %v1748 = vadd.f32 0.0, %v1747
        %1749 = vmatmul.f32.gmra.mxu0 %v1407
        %v1750 = vpop.f32.mrf.mxu0
        %v1751 = vadd.f32 0.0, %v1750
        %1752 = vmatmul.f32.gmra.mxu0 %v1411
        %v1753 = vpop.f32.mrf.mxu0
        %v1754 = vadd.f32 0.0, %v1753
        %1755 = vmatmul.f32.gmra.mxu0 %v1415
        %v1756 = vpop.f32.mrf.mxu0
        %v1757 = vadd.f32 0.0, %v1756
        %1758 = vmatmul.f32.gmra.mxu0 %v1419
        %v1759 = vpop.f32.mrf.mxu0
        %v1760 = vadd.f32 0.0, %v1759
        %1761 = vmatmul.f32.gmra.mxu0 %v1423
        %v1762 = vpop.f32.mrf.mxu0
        %v1763 = vadd.f32 0.0, %v1762
        %1764 = vmatmul.f32.gmra.mxu0 %v1427
        %v1765 = vpop.f32.mrf.mxu0
        %v1766 = vadd.f32 0.0, %v1765
        %1767 = vdwg.mxu0
        %1768 = vmatpush.xpose.msra.mxu0 0.0
        %1769 = vmatpush.xpose.msra.mxu0 0.0
        %1770 = vmatpush.xpose.msra.mxu0 0.0
        %1771 = vmatpush.xpose.msra.mxu0 0.0
        %1772 = vmatpush.xpose.msra.mxu0 0.0
        %1773 = vmatpush.xpose.msra.mxu0 0.0
        %1774 = vmatpush.xpose.msra.mxu0 0.0
        %1775 = vmatpush.xpose.msra.mxu0 0.0
        %1776 = vmatpush.xpose.msra.mxu0 0.0
        %1777 = vmatpush.xpose.msra.mxu0 0.0
        %1778 = vmatpush.xpose.msra.mxu0 0.0
        %1779 = vmatpush.xpose.msra.mxu0 0.0
        %1780 = vmatpush.xpose.msra.mxu0 %v489
        %1781 = vmatpush.xpose.msra.mxu0 %v487
        %1782 = vmatpush.xpose.msra.mxu0 %v485
        %1783 = vmatpush.xpose.msra.mxu0 %v483
        %1784 = vmatmul.f32.gmra.mxu0 %v1305
        %v1785 = vpop.f32.mrf.mxu0
        %v1786 = vadd.f32 %v1673, %v1785
        %1787 = vmatmul.f32.gmra.mxu0 %v1309
        %v1788 = vpop.f32.mrf.mxu0
        %v1789 = vadd.f32 %v1676, %v1788
        %1790 = vmatmul.f32.gmra.mxu0 %v1313
        %v1791 = vpop.f32.mrf.mxu0
        %v1792 = vadd.f32 %v1679, %v1791
        %1793 = vmatmul.f32.gmra.mxu0 %v1317
        %v1794 = vpop.f32.mrf.mxu0
        %v1795 = vadd.f32 %v1682, %v1794
        %1796 = vmatmul.f32.gmra.mxu0 %v1321
        %v1797 = vpop.f32.mrf.mxu0
        %v1798 = vadd.f32 %v1685, %v1797
        %1799 = vmatmul.f32.gmra.mxu0 %v1325
        %v1800 = vpop.f32.mrf.mxu0
        %v1801 = vadd.f32 %v1688, %v1800
        %1802 = vmatmul.f32.gmra.mxu0 %v1329
        %v1803 = vpop.f32.mrf.mxu0
        %v1804 = vadd.f32 %v1691, %v1803
        %1805 = vmatmul.f32.gmra.mxu0 %v1333
        %v1806 = vpop.f32.mrf.mxu0
        %v1807 = vadd.f32 %v1694, %v1806
        %1808 = vmatmul.f32.gmra.mxu0 %v1337
        %v1809 = vpop.f32.mrf.mxu0
        %v1810 = vadd.f32 %v1697, %v1809
        %1811 = vmatmul.f32.gmra.mxu0 %v1341
        %v1812 = vpop.f32.mrf.mxu0
        %v1813 = vadd.f32 %v1700, %v1812
        %1814 = vmatmul.f32.gmra.mxu0 %v1345
        %v1815 = vpop.f32.mrf.mxu0
        %v1816 = vadd.f32 %v1703, %v1815
        %1817 = vmatmul.f32.gmra.mxu0 %v1349
        %v1818 = vpop.f32.mrf.mxu0
        %v1819 = vadd.f32 %v1706, %v1818
        %1820 = vmatmul.f32.gmra.mxu0 %v1353
        %v1821 = vpop.f32.mrf.mxu0
        %v1822 = vadd.f32 %v1709, %v1821
        %1823 = vmatmul.f32.gmra.mxu0 %v1357
        %v1824 = vpop.f32.mrf.mxu0
        %v1825 = vadd.f32 %v1712, %v1824
        %1826 = vmatmul.f32.gmra.mxu0 %v1361
        %v1827 = vpop.f32.mrf.mxu0
        %v1828 = vadd.f32 %v1715, %v1827
        %1829 = vmatmul.f32.gmra.mxu0 %v1365
        %v1830 = vpop.f32.mrf.mxu0
        %v1831 = vadd.f32 %v1718, %v1830
        %1832 = vmatmul.f32.gmra.mxu0 %v1369
        %v1833 = vpop.f32.mrf.mxu0
        %v1834 = vadd.f32 %v1721, %v1833
        %1835 = vmatmul.f32.gmra.mxu0 %v1373
        %v1836 = vpop.f32.mrf.mxu0
        %v1837 = vadd.f32 %v1724, %v1836
        %1838 = vmatmul.f32.gmra.mxu0 %v1377
        %v1839 = vpop.f32.mrf.mxu0
        %v1840 = vadd.f32 %v1727, %v1839
        %1841 = vmatmul.f32.gmra.mxu0 %v1381
        %v1842 = vpop.f32.mrf.mxu0
        %v1843 = vadd.f32 %v1730, %v1842
        %1844 = vmatmul.f32.gmra.mxu0 %v1385
        %v1845 = vpop.f32.mrf.mxu0
        %v1846 = vadd.f32 %v1733, %v1845
        %1847 = vmatmul.f32.gmra.mxu0 %v1389
        %v1848 = vpop.f32.mrf.mxu0
        %v1849 = vadd.f32 %v1736, %v1848
        %1850 = vmatmul.f32.gmra.mxu0 %v1393
        %v1851 = vpop.f32.mrf.mxu0
        %v1852 = vadd.f32 %v1739, %v1851
        %1853 = vmatmul.f32.gmra.mxu0 %v1397
        %v1854 = vpop.f32.mrf.mxu0
        %v1855 = vadd.f32 %v1742, %v1854
        %1856 = vmatmul.f32.gmra.mxu0 %v1401
        %v1857 = vpop.f32.mrf.mxu0
        %v1858 = vadd.f32 %v1745, %v1857
        %1859 = vmatmul.f32.gmra.mxu0 %v1405
        %v1860 = vpop.f32.mrf.mxu0
        %v1861 = vadd.f32 %v1748, %v1860
        %1862 = vmatmul.f32.gmra.mxu0 %v1409
        %v1863 = vpop.f32.mrf.mxu0
        %v1864 = vadd.f32 %v1751, %v1863
        %1865 = vmatmul.f32.gmra.mxu0 %v1413
        %v1866 = vpop.f32.mrf.mxu0
        %v1867 = vadd.f32 %v1754, %v1866
        %1868 = vmatmul.f32.gmra.mxu0 %v1417
        %v1869 = vpop.f32.mrf.mxu0
        %v1870 = vadd.f32 %v1757, %v1869
        %1871 = vmatmul.f32.gmra.mxu0 %v1421
        %v1872 = vpop.f32.mrf.mxu0
        %v1873 = vadd.f32 %v1760, %v1872
        %1874 = vmatmul.f32.gmra.mxu0 %v1425
        %v1875 = vpop.f32.mrf.mxu0
        %v1876 = vadd.f32 %v1763, %v1875
        %1877 = vmatmul.f32.gmra.mxu0 %v1429
        %v1878 = vpop.f32.mrf.mxu0
        %v1879 = vadd.f32 %v1766, %v1878
        %1880 = vdwg.mxu0
        %v1881 = vld [vmem:[#allocation4] sm:$0xff]
        %v1882 = vld [vmem:[#allocation4 + $0x8] sm:$0xff]
        %v1883 = vld [vmem:[#allocation4 + $0x10] sm:$0xff]
        %v1884 = vld [vmem:[#allocation4 + $0x18] sm:$0xff]
        %v1885 = vld [vmem:[#allocation4 + $0x20] sm:$0xff]
        %v1886 = vld [vmem:[#allocation4 + $0x28] sm:$0xff]
        %v1887 = vld [vmem:[#allocation4 + $0x30] sm:$0xff]
        %v1888 = vld [vmem:[#allocation4 + $0x38] sm:$0xff]
        %v1889 = vld [vmem:[#allocation4 + $0x40] sm:$0xff]
        %v1890 = vld [vmem:[#allocation4 + $0x48] sm:$0xff]
        %v1891 = vld [vmem:[#allocation4 + $0x50] sm:$0xff]
        %v1892 = vld [vmem:[#allocation4 + $0x58] sm:$0xff]
        %v1893 = vld [vmem:[#allocation4 + $0x60] sm:$0xff]
        %v1894 = vld [vmem:[#allocation4 + $0x68] sm:$0xff]
        %v1895 = vld [vmem:[#allocation4 + $0x70] sm:$0xff]
        %v1896 = vld [vmem:[#allocation4 + $0x78] sm:$0xff]
        %v1897 = vld [vmem:[#allocation4 + $0x80] sm:$0xff]
        %v1898 = vld [vmem:[#allocation4 + $0x88] sm:$0xff]
        %v1899 = vld [vmem:[#allocation4 + $0x90] sm:$0xff]
        %v1900 = vld [vmem:[#allocation4 + $0x98] sm:$0xff]
        %v1901 = vld [vmem:[#allocation4 + $0xa0] sm:$0xff]
        %v1902 = vld [vmem:[#allocation4 + $0xa8] sm:$0xff]
        %v1903 = vld [vmem:[#allocation4 + $0xb0] sm:$0xff]
        %v1904 = vld [vmem:[#allocation4 + $0xb8] sm:$0xff]
        %v1905 = vld [vmem:[#allocation4 + $0xc0] sm:$0xff]
        %v1906 = vld [vmem:[#allocation4 + $0xc8] sm:$0xff]
        %v1907 = vld [vmem:[#allocation4 + $0xd0] sm:$0xff]
        %v1908 = vld [vmem:[#allocation4 + $0xd8] sm:$0xff]
        %v1909 = vld [vmem:[#allocation4 + $0xe0] sm:$0xff]
        %v1910 = vld [vmem:[#allocation4 + $0xe8] sm:$0xff]
        %v1911 = vld [vmem:[#allocation4 + $0xf0] sm:$0xff]
        %v1912 = vld [vmem:[#allocation4 + $0xf8] sm:$0xff]
        %1914 = vset.pattern.permute.xlu0 0
        %1915 = vperm.xlu0 %1914, %v1015
        %v1916 = vpop.permute.xlu0 %1915
        %1919 = vset.pattern.permute.xlu0 0
        %1920 = vperm.xlu0 %1919, %v1017
        %v1921 = vpop.permute.xlu0 %1920
        %1924 = vset.pattern.permute.xlu0 0
        %1925 = vperm.xlu0 %1924, %v1019
        %v1926 = vpop.permute.xlu0 %1925
        %1929 = vset.pattern.permute.xlu0 0
        %1930 = vperm.xlu0 %1929, %v1021
        %v1931 = vpop.permute.xlu0 %1930
        %1934 = vset.pattern.permute.xlu0 0
        %1935 = vperm.xlu0 %1934, %v1023
        %v1936 = vpop.permute.xlu0 %1935
        %1939 = vset.pattern.permute.xlu0 0
        %1940 = vperm.xlu0 %1939, %v1025
        %v1941 = vpop.permute.xlu0 %1940
        %1944 = vset.pattern.permute.xlu0 0
        %1945 = vperm.xlu0 %1944, %v1027
        %v1946 = vpop.permute.xlu0 %1945
        %1949 = vset.pattern.permute.xlu0 0
        %1950 = vperm.xlu0 %1949, %v1029
        %v1951 = vpop.permute.xlu0 %1950
        %1954 = vset.pattern.permute.xlu0 0
        %1955 = vperm.xlu0 %1954, %v1031
        %v1956 = vpop.permute.xlu0 %1955
        %1959 = vset.pattern.permute.xlu0 0
        %1960 = vperm.xlu0 %1959, %v1033
        %v1961 = vpop.permute.xlu0 %1960
        %1964 = vset.pattern.permute.xlu0 0
        %1965 = vperm.xlu0 %1964, %v1035
        %v1966 = vpop.permute.xlu0 %1965
        %1969 = vset.pattern.permute.xlu0 0
        %1970 = vperm.xlu0 %1969, %v1037
        %v1971 = vpop.permute.xlu0 %1970
        %1974 = vset.pattern.permute.xlu0 0
        %1975 = vperm.xlu0 %1974, %v1039
        %v1976 = vpop.permute.xlu0 %1975
        %1979 = vset.pattern.permute.xlu0 0
        %1980 = vperm.xlu0 %1979, %v1041
        %v1981 = vpop.permute.xlu0 %1980
        %1984 = vset.pattern.permute.xlu0 0
        %1985 = vperm.xlu0 %1984, %v1043
        %v1986 = vpop.permute.xlu0 %1985
        %1989 = vset.pattern.permute.xlu0 0
        %1990 = vperm.xlu0 %1989, %v1045
        %v1991 = vpop.permute.xlu0 %1990
        %1994 = vset.pattern.permute.xlu0 0
        %1995 = vperm.xlu0 %1994, %v1047
        %v1996 = vpop.permute.xlu0 %1995
        %1999 = vset.pattern.permute.xlu0 0
        %2000 = vperm.xlu0 %1999, %v1049
        %v2001 = vpop.permute.xlu0 %2000
        %2004 = vset.pattern.permute.xlu0 0
        %2005 = vperm.xlu0 %2004, %v1051
        %v2006 = vpop.permute.xlu0 %2005
        %2009 = vset.pattern.permute.xlu0 0
        %2010 = vperm.xlu0 %2009, %v1053
        %v2011 = vpop.permute.xlu0 %2010
        %2014 = vset.pattern.permute.xlu0 0
        %2015 = vperm.xlu0 %2014, %v1055
        %v2016 = vpop.permute.xlu0 %2015
        %2019 = vset.pattern.permute.xlu0 0
        %2020 = vperm.xlu0 %2019, %v1057
        %v2021 = vpop.permute.xlu0 %2020
        %2024 = vset.pattern.permute.xlu0 0
        %2025 = vperm.xlu0 %2024, %v1059
        %v2026 = vpop.permute.xlu0 %2025
        %2029 = vset.pattern.permute.xlu0 0
        %2030 = vperm.xlu0 %2029, %v1061
        %v2031 = vpop.permute.xlu0 %2030
        %2034 = vset.pattern.permute.xlu0 0
        %2035 = vperm.xlu0 %2034, %v1063
        %v2036 = vpop.permute.xlu0 %2035
        %2039 = vset.pattern.permute.xlu0 0
        %2040 = vperm.xlu0 %2039, %v1065
        %v2041 = vpop.permute.xlu0 %2040
        %2044 = vset.pattern.permute.xlu0 0
        %2045 = vperm.xlu0 %2044, %v1067
        %v2046 = vpop.permute.xlu0 %2045
        %2049 = vset.pattern.permute.xlu0 0
        %2050 = vperm.xlu0 %2049, %v1069
        %v2051 = vpop.permute.xlu0 %2050
        %2054 = vset.pattern.permute.xlu0 0
        %2055 = vperm.xlu0 %2054, %v1071
        %v2056 = vpop.permute.xlu0 %2055
        %2059 = vset.pattern.permute.xlu0 0
        %2060 = vperm.xlu0 %2059, %v1073
        %v2061 = vpop.permute.xlu0 %2060
        %2064 = vset.pattern.permute.xlu0 0
        %2065 = vperm.xlu0 %2064, %v1075
        %v2066 = vpop.permute.xlu0 %2065
        %2069 = vset.pattern.permute.xlu0 0
        %2070 = vperm.xlu0 %2069, %v1077
        %v2071 = vpop.permute.xlu0 %2070
        %v2073 = vmul.f32 %v1916, %v1881
        %v2074 = vmul.f32 %v1921, %v1882
        %v2075 = vmul.f32 %v1926, %v1883
        %v2076 = vmul.f32 %v1931, %v1884
        %v2077 = vmul.f32 %v1936, %v1885
        %v2078 = vmul.f32 %v1941, %v1886
        %v2079 = vmul.f32 %v1946, %v1887
        %v2080 = vmul.f32 %v1951, %v1888
        %v2081 = vmul.f32 %v1956, %v1889
        %v2082 = vmul.f32 %v1961, %v1890
        %v2083 = vmul.f32 %v1966, %v1891
        %v2084 = vmul.f32 %v1971, %v1892
        %v2085 = vmul.f32 %v1976, %v1893
        %v2086 = vmul.f32 %v1981, %v1894
        %v2087 = vmul.f32 %v1986, %v1895
        %v2088 = vmul.f32 %v1991, %v1896
        %v2089 = vmul.f32 %v1996, %v1897
        %v2090 = vmul.f32 %v2001, %v1898
        %v2091 = vmul.f32 %v2006, %v1899
        %v2092 = vmul.f32 %v2011, %v1900
        %v2093 = vmul.f32 %v2016, %v1901
        %v2094 = vmul.f32 %v2021, %v1902
        %v2095 = vmul.f32 %v2026, %v1903
        %v2096 = vmul.f32 %v2031, %v1904
        %v2097 = vmul.f32 %v2036, %v1905
        %v2098 = vmul.f32 %v2041, %v1906
        %v2099 = vmul.f32 %v2046, %v1907
        %v2100 = vmul.f32 %v2051, %v1908
        %v2101 = vmul.f32 %v2056, %v1909
        %v2102 = vmul.f32 %v2061, %v1910
        %v2103 = vmul.f32 %v2066, %v1911
        %v2104 = vmul.f32 %v2071, %v1912
        %v2105 = vadd.f32 %v2073, %v1786
        %v2106 = vadd.f32 %v2074, %v1789
        %v2107 = vadd.f32 %v2075, %v1792
        %v2108 = vadd.f32 %v2076, %v1795
        %v2109 = vadd.f32 %v2077, %v1798
        %v2110 = vadd.f32 %v2078, %v1801
        %v2111 = vadd.f32 %v2079, %v1804
        %v2112 = vadd.f32 %v2080, %v1807
        %v2113 = vadd.f32 %v2081, %v1810
        %v2114 = vadd.f32 %v2082, %v1813
        %v2115 = vadd.f32 %v2083, %v1816
        %v2116 = vadd.f32 %v2084, %v1819
        %v2117 = vadd.f32 %v2085, %v1822
        %v2118 = vadd.f32 %v2086, %v1825
        %v2119 = vadd.f32 %v2087, %v1828
        %v2120 = vadd.f32 %v2088, %v1831
        %v2121 = vadd.f32 %v2089, %v1834
        %v2122 = vadd.f32 %v2090, %v1837
        %v2123 = vadd.f32 %v2091, %v1840
        %v2124 = vadd.f32 %v2092, %v1843
        %v2125 = vadd.f32 %v2093, %v1846
        %v2126 = vadd.f32 %v2094, %v1849
        %v2127 = vadd.f32 %v2095, %v1852
        %v2128 = vadd.f32 %v2096, %v1855
        %v2129 = vadd.f32 %v2097, %v1858
        %v2130 = vadd.f32 %v2098, %v1861
        %v2131 = vadd.f32 %v2099, %v1864
        %v2132 = vadd.f32 %v2100, %v1867
        %v2133 = vadd.f32 %v2101, %v1870
        %v2134 = vadd.f32 %v2102, %v1873
        %v2135 = vadd.f32 %v2103, %v1876
        %v2136 = vadd.f32 %v2104, %v1879
        %vm2137 = vcmask 261120
        %2138 = vst.msk [vmem:[#allocation4] sm:$0xff] %vm2137, %v2105
        %2139 = vst.msk [vmem:[#allocation4 + $0x8] sm:$0xff] %vm2137, %v2106
        %2140 = vst.msk [vmem:[#allocation4 + $0x10] sm:$0xff] %vm2137, %v2107
        %2141 = vst.msk [vmem:[#allocation4 + $0x18] sm:$0xff] %vm2137, %v2108
        %2142 = vst.msk [vmem:[#allocation4 + $0x20] sm:$0xff] %vm2137, %v2109
        %2143 = vst.msk [vmem:[#allocation4 + $0x28] sm:$0xff] %vm2137, %v2110
        %2144 = vst.msk [vmem:[#allocation4 + $0x30] sm:$0xff] %vm2137, %v2111
        %2145 = vst.msk [vmem:[#allocation4 + $0x38] sm:$0xff] %vm2137, %v2112
        %2146 = vst.msk [vmem:[#allocation4 + $0x40] sm:$0xff] %vm2137, %v2113
        %2147 = vst.msk [vmem:[#allocation4 + $0x48] sm:$0xff] %vm2137, %v2114
        %2148 = vst.msk [vmem:[#allocation4 + $0x50] sm:$0xff] %vm2137, %v2115
        %2149 = vst.msk [vmem:[#allocation4 + $0x58] sm:$0xff] %vm2137, %v2116
        %2150 = vst.msk [vmem:[#allocation4 + $0x60] sm:$0xff] %vm2137, %v2117
        %2151 = vst.msk [vmem:[#allocation4 + $0x68] sm:$0xff] %vm2137, %v2118
        %2152 = vst.msk [vmem:[#allocation4 + $0x70] sm:$0xff] %vm2137, %v2119
        %2153 = vst.msk [vmem:[#allocation4 + $0x78] sm:$0xff] %vm2137, %v2120
        %2154 = vst.msk [vmem:[#allocation4 + $0x80] sm:$0xff] %vm2137, %v2121
        %2155 = vst.msk [vmem:[#allocation4 + $0x88] sm:$0xff] %vm2137, %v2122
        %2156 = vst.msk [vmem:[#allocation4 + $0x90] sm:$0xff] %vm2137, %v2123
        %2157 = vst.msk [vmem:[#allocation4 + $0x98] sm:$0xff] %vm2137, %v2124
        %2158 = vst.msk [vmem:[#allocation4 + $0xa0] sm:$0xff] %vm2137, %v2125
        %2159 = vst.msk [vmem:[#allocation4 + $0xa8] sm:$0xff] %vm2137, %v2126
        %2160 = vst.msk [vmem:[#allocation4 + $0xb0] sm:$0xff] %vm2137, %v2127
        %2161 = vst.msk [vmem:[#allocation4 + $0xb8] sm:$0xff] %vm2137, %v2128
        %2162 = vst.msk [vmem:[#allocation4 + $0xc0] sm:$0xff] %vm2137, %v2129
        %2163 = vst.msk [vmem:[#allocation4 + $0xc8] sm:$0xff] %vm2137, %v2130
        %2164 = vst.msk [vmem:[#allocation4 + $0xd0] sm:$0xff] %vm2137, %v2131
        %2165 = vst.msk [vmem:[#allocation4 + $0xd8] sm:$0xff] %vm2137, %v2132
        %2166 = vst.msk [vmem:[#allocation4 + $0xe0] sm:$0xff] %vm2137, %v2133
        %2167 = vst.msk [vmem:[#allocation4 + $0xe8] sm:$0xff] %vm2137, %v2134
        %2168 = vst.msk [vmem:[#allocation4 + $0xf0] sm:$0xff] %vm2137, %v2135
        %2169 = vst.msk [vmem:[#allocation4 + $0xf8] sm:$0xff] %vm2137, %v2136
        %2170 = vst.msk [vmem:[#allocation2] sm:$0xff] %vm1622, %v950
        %2171 = vst.msk [vmem:[#allocation2 + $0x8] sm:$0xff] %vm1622, %v951
        %2172 = vst.msk [vmem:[#allocation2 + $0x10] sm:$0xff] %vm1622, %v952
        %2173 = vst.msk [vmem:[#allocation2 + $0x18] sm:$0xff] %vm1622, %v953
        %2174 = vst.msk [vmem:[#allocation2 + $0x20] sm:$0xff] %vm1622, %v954
        %2175 = vst.msk [vmem:[#allocation2 + $0x28] sm:$0xff] %vm1622, %v955
        %2176 = vst.msk [vmem:[#allocation2 + $0x30] sm:$0xff] %vm1622, %v956
        %2177 = vst.msk [vmem:[#allocation2 + $0x38] sm:$0xff] %vm1622, %v957
        %2178 = vst.msk [vmem:[#allocation2 + $0x40] sm:$0xff] %vm1622, %v958
        %2179 = vst.msk [vmem:[#allocation2 + $0x48] sm:$0xff] %vm1622, %v959
        %2180 = vst.msk [vmem:[#allocation2 + $0x50] sm:$0xff] %vm1622, %v960
        %2181 = vst.msk [vmem:[#allocation2 + $0x58] sm:$0xff] %vm1622, %v961
        %2182 = vst.msk [vmem:[#allocation2 + $0x60] sm:$0xff] %vm1622, %v962
        %2183 = vst.msk [vmem:[#allocation2 + $0x68] sm:$0xff] %vm1622, %v963
        %2184 = vst.msk [vmem:[#allocation2 + $0x70] sm:$0xff] %vm1622, %v964
        %2185 = vst.msk [vmem:[#allocation2 + $0x78] sm:$0xff] %vm1622, %v965
        %2186 = vst.msk [vmem:[#allocation2 + $0x80] sm:$0xff] %vm1622, %v966
        %2187 = vst.msk [vmem:[#allocation2 + $0x88] sm:$0xff] %vm1622, %v967
        %2188 = vst.msk [vmem:[#allocation2 + $0x90] sm:$0xff] %vm1622, %v968
        %2189 = vst.msk [vmem:[#allocation2 + $0x98] sm:$0xff] %vm1622, %v969
        %2190 = vst.msk [vmem:[#allocation2 + $0xa0] sm:$0xff] %vm1622, %v970
        %2191 = vst.msk [vmem:[#allocation2 + $0xa8] sm:$0xff] %vm1622, %v971
        %2192 = vst.msk [vmem:[#allocation2 + $0xb0] sm:$0xff] %vm1622, %v972
        %2193 = vst.msk [vmem:[#allocation2 + $0xb8] sm:$0xff] %vm1622, %v973
        %2194 = vst.msk [vmem:[#allocation2 + $0xc0] sm:$0xff] %vm1622, %v974
        %2195 = vst.msk [vmem:[#allocation2 + $0xc8] sm:$0xff] %vm1622, %v975
        %2196 = vst.msk [vmem:[#allocation2 + $0xd0] sm:$0xff] %vm1622, %v976
        %2197 = vst.msk [vmem:[#allocation2 + $0xd8] sm:$0xff] %vm1622, %v977
        %2198 = vst.msk [vmem:[#allocation2 + $0xe0] sm:$0xff] %vm1622, %v978
        %2199 = vst.msk [vmem:[#allocation2 + $0xe8] sm:$0xff] %vm1622, %v979
        %2200 = vst.msk [vmem:[#allocation2 + $0xf0] sm:$0xff] %vm1622, %v980
        %2201 = vst.msk [vmem:[#allocation2 + $0xf8] sm:$0xff] %vm1622, %v981
        // Predicated region
        $region41: #{tpu_custom_call.1} parent=35 // pred_check
          %p2202 = pneg %p342
        $region42: #{tpu_custom_call.1} parent=35 // pred_check_branch
          %2204 = sbr.rel (%p2202) target = $region44
        $region43: #{tpu_custom_call.1} parent=35 // pred_region
          %v2205 = vld [vmem:[#allocation4] sm:$0xff]
          %v2206 = vld [vmem:[#allocation4 + $0x8] sm:$0xff]
          %v2207 = vld [vmem:[#allocation4 + $0x10] sm:$0xff]
          %v2208 = vld [vmem:[#allocation4 + $0x18] sm:$0xff]
          %v2209 = vld [vmem:[#allocation4 + $0x20] sm:$0xff]
          %v2210 = vld [vmem:[#allocation4 + $0x28] sm:$0xff]
          %v2211 = vld [vmem:[#allocation4 + $0x30] sm:$0xff]
          %v2212 = vld [vmem:[#allocation4 + $0x38] sm:$0xff]
          %v2213 = vld [vmem:[#allocation4 + $0x40] sm:$0xff]
          %v2214 = vld [vmem:[#allocation4 + $0x48] sm:$0xff]
          %v2215 = vld [vmem:[#allocation4 + $0x50] sm:$0xff]
          %v2216 = vld [vmem:[#allocation4 + $0x58] sm:$0xff]
          %v2217 = vld [vmem:[#allocation4 + $0x60] sm:$0xff]
          %v2218 = vld [vmem:[#allocation4 + $0x68] sm:$0xff]
          %v2219 = vld [vmem:[#allocation4 + $0x70] sm:$0xff]
          %v2220 = vld [vmem:[#allocation4 + $0x78] sm:$0xff]
          %v2221 = vld [vmem:[#allocation4 + $0x80] sm:$0xff]
          %v2222 = vld [vmem:[#allocation4 + $0x88] sm:$0xff]
          %v2223 = vld [vmem:[#allocation4 + $0x90] sm:$0xff]
          %v2224 = vld [vmem:[#allocation4 + $0x98] sm:$0xff]
          %v2225 = vld [vmem:[#allocation4 + $0xa0] sm:$0xff]
          %v2226 = vld [vmem:[#allocation4 + $0xa8] sm:$0xff]
          %v2227 = vld [vmem:[#allocation4 + $0xb0] sm:$0xff]
          %v2228 = vld [vmem:[#allocation4 + $0xb8] sm:$0xff]
          %v2229 = vld [vmem:[#allocation4 + $0xc0] sm:$0xff]
          %v2230 = vld [vmem:[#allocation4 + $0xc8] sm:$0xff]
          %v2231 = vld [vmem:[#allocation4 + $0xd0] sm:$0xff]
          %v2232 = vld [vmem:[#allocation4 + $0xd8] sm:$0xff]
          %v2233 = vld [vmem:[#allocation4 + $0xe0] sm:$0xff]
          %v2234 = vld [vmem:[#allocation4 + $0xe8] sm:$0xff]
          %v2235 = vld [vmem:[#allocation4 + $0xf0] sm:$0xff]
          %v2236 = vld [vmem:[#allocation4 + $0xf8] sm:$0xff]
          %v2237 = vld [vmem:[#allocation3] sm:$0xff]
          %v2238 = vld [vmem:[#allocation3 + $0x8] sm:$0xff]
          %v2239 = vld [vmem:[#allocation3 + $0x10] sm:$0xff]
          %v2240 = vld [vmem:[#allocation3 + $0x18] sm:$0xff]
          %v2241 = vld [vmem:[#allocation3 + $0x20] sm:$0xff]
          %v2242 = vld [vmem:[#allocation3 + $0x28] sm:$0xff]
          %v2243 = vld [vmem:[#allocation3 + $0x30] sm:$0xff]
          %v2244 = vld [vmem:[#allocation3 + $0x38] sm:$0xff]
          %v2245 = vld [vmem:[#allocation3 + $0x40] sm:$0xff]
          %v2246 = vld [vmem:[#allocation3 + $0x48] sm:$0xff]
          %v2247 = vld [vmem:[#allocation3 + $0x50] sm:$0xff]
          %v2248 = vld [vmem:[#allocation3 + $0x58] sm:$0xff]
          %v2249 = vld [vmem:[#allocation3 + $0x60] sm:$0xff]
          %v2250 = vld [vmem:[#allocation3 + $0x68] sm:$0xff]
          %v2251 = vld [vmem:[#allocation3 + $0x70] sm:$0xff]
          %v2252 = vld [vmem:[#allocation3 + $0x78] sm:$0xff]
          %v2253 = vld [vmem:[#allocation3 + $0x80] sm:$0xff]
          %v2254 = vld [vmem:[#allocation3 + $0x88] sm:$0xff]
          %v2255 = vld [vmem:[#allocation3 + $0x90] sm:$0xff]
          %v2256 = vld [vmem:[#allocation3 + $0x98] sm:$0xff]
          %v2257 = vld [vmem:[#allocation3 + $0xa0] sm:$0xff]
          %v2258 = vld [vmem:[#allocation3 + $0xa8] sm:$0xff]
          %v2259 = vld [vmem:[#allocation3 + $0xb0] sm:$0xff]
          %v2260 = vld [vmem:[#allocation3 + $0xb8] sm:$0xff]
          %v2261 = vld [vmem:[#allocation3 + $0xc0] sm:$0xff]
          %v2262 = vld [vmem:[#allocation3 + $0xc8] sm:$0xff]
          %v2263 = vld [vmem:[#allocation3 + $0xd0] sm:$0xff]
          %v2264 = vld [vmem:[#allocation3 + $0xd8] sm:$0xff]
          %v2265 = vld [vmem:[#allocation3 + $0xe0] sm:$0xff]
          %v2266 = vld [vmem:[#allocation3 + $0xe8] sm:$0xff]
          %v2267 = vld [vmem:[#allocation3 + $0xf0] sm:$0xff]
          %v2268 = vld [vmem:[#allocation3 + $0xf8] sm:$0xff]
          %2270 = vset.pattern.permute.xlu0 0
          %2271 = vperm.xlu0 %2270, %v2237
          %v2272 = vpop.permute.xlu0 %2271
          %2275 = vset.pattern.permute.xlu0 0
          %2276 = vperm.xlu0 %2275, %v2238
          %v2277 = vpop.permute.xlu0 %2276
          %2280 = vset.pattern.permute.xlu0 0
          %2281 = vperm.xlu0 %2280, %v2239
          %v2282 = vpop.permute.xlu0 %2281
          %2285 = vset.pattern.permute.xlu0 0
          %2286 = vperm.xlu0 %2285, %v2240
          %v2287 = vpop.permute.xlu0 %2286
          %2290 = vset.pattern.permute.xlu0 0
          %2291 = vperm.xlu0 %2290, %v2241
          %v2292 = vpop.permute.xlu0 %2291
          %2295 = vset.pattern.permute.xlu0 0
          %2296 = vperm.xlu0 %2295, %v2242
          %v2297 = vpop.permute.xlu0 %2296
          %2300 = vset.pattern.permute.xlu0 0
          %2301 = vperm.xlu0 %2300, %v2243
          %v2302 = vpop.permute.xlu0 %2301
          %2305 = vset.pattern.permute.xlu0 0
          %2306 = vperm.xlu0 %2305, %v2244
          %v2307 = vpop.permute.xlu0 %2306
          %2310 = vset.pattern.permute.xlu0 0
          %2311 = vperm.xlu0 %2310, %v2245
          %v2312 = vpop.permute.xlu0 %2311
          %2315 = vset.pattern.permute.xlu0 0
          %2316 = vperm.xlu0 %2315, %v2246
          %v2317 = vpop.permute.xlu0 %2316
          %2320 = vset.pattern.permute.xlu0 0
          %2321 = vperm.xlu0 %2320, %v2247
          %v2322 = vpop.permute.xlu0 %2321
          %2325 = vset.pattern.permute.xlu0 0
          %2326 = vperm.xlu0 %2325, %v2248
          %v2327 = vpop.permute.xlu0 %2326
          %2330 = vset.pattern.permute.xlu0 0
          %2331 = vperm.xlu0 %2330, %v2249
          %v2332 = vpop.permute.xlu0 %2331
          %2335 = vset.pattern.permute.xlu0 0
          %2336 = vperm.xlu0 %2335, %v2250
          %v2337 = vpop.permute.xlu0 %2336
          %2340 = vset.pattern.permute.xlu0 0
          %2341 = vperm.xlu0 %2340, %v2251
          %v2342 = vpop.permute.xlu0 %2341
          %2345 = vset.pattern.permute.xlu0 0
          %2346 = vperm.xlu0 %2345, %v2252
          %v2347 = vpop.permute.xlu0 %2346
          %2350 = vset.pattern.permute.xlu0 0
          %2351 = vperm.xlu0 %2350, %v2253
          %v2352 = vpop.permute.xlu0 %2351
          %2355 = vset.pattern.permute.xlu0 0
          %2356 = vperm.xlu0 %2355, %v2254
          %v2357 = vpop.permute.xlu0 %2356
          %2360 = vset.pattern.permute.xlu0 0
          %2361 = vperm.xlu0 %2360, %v2255
          %v2362 = vpop.permute.xlu0 %2361
          %2365 = vset.pattern.permute.xlu0 0
          %2366 = vperm.xlu0 %2365, %v2256
          %v2367 = vpop.permute.xlu0 %2366
          %2370 = vset.pattern.permute.xlu0 0
          %2371 = vperm.xlu0 %2370, %v2257
          %v2372 = vpop.permute.xlu0 %2371
          %2375 = vset.pattern.permute.xlu0 0
          %2376 = vperm.xlu0 %2375, %v2258
          %v2377 = vpop.permute.xlu0 %2376
          %2380 = vset.pattern.permute.xlu0 0
          %2381 = vperm.xlu0 %2380, %v2259
          %v2382 = vpop.permute.xlu0 %2381
          %2385 = vset.pattern.permute.xlu0 0
          %2386 = vperm.xlu0 %2385, %v2260
          %v2387 = vpop.permute.xlu0 %2386
          %2390 = vset.pattern.permute.xlu0 0
          %2391 = vperm.xlu0 %2390, %v2261
          %v2392 = vpop.permute.xlu0 %2391
          %2395 = vset.pattern.permute.xlu0 0
          %2396 = vperm.xlu0 %2395, %v2262
          %v2397 = vpop.permute.xlu0 %2396
          %2400 = vset.pattern.permute.xlu0 0
          %2401 = vperm.xlu0 %2400, %v2263
          %v2402 = vpop.permute.xlu0 %2401
          %2405 = vset.pattern.permute.xlu0 0
          %2406 = vperm.xlu0 %2405, %v2264
          %v2407 = vpop.permute.xlu0 %2406
          %2410 = vset.pattern.permute.xlu0 0
          %2411 = vperm.xlu0 %2410, %v2265
          %v2412 = vpop.permute.xlu0 %2411
          %2415 = vset.pattern.permute.xlu0 0
          %2416 = vperm.xlu0 %2415, %v2266
          %v2417 = vpop.permute.xlu0 %2416
          %2420 = vset.pattern.permute.xlu0 0
          %2421 = vperm.xlu0 %2420, %v2267
          %v2422 = vpop.permute.xlu0 %2421
          %2425 = vset.pattern.permute.xlu0 0
          %2426 = vperm.xlu0 %2425, %v2268
          %v2427 = vpop.permute.xlu0 %2426
          %v2429 = vrcp.pop %v2272
          %v2430 = vmul.f32 %v2272, %v2429
          %v2431 = vsub.f32 1.0, %v2430
          %v2432 = vmul.f32 %v2429, %v2431
          %v2433 = vadd.f32 %v2429, %v2432
          %vm2434 = vweird.f32 %v2272
          %vm2435 = vweird.f32 %v2429
          %vm2436 = vmor %vm2434, %vm2435
          %v2437 = vsel %vm2436, %v2429, %v2433
          %v2438 = vand.u32 2147483647, %v2272
          %vm2439 = vcmp.eq.f32.partialorder %v2438, 8.507059e+37
          %v2440 = vand.u32 %v2272, 2147483648
          %v2441 = vor.u32 1.1754944e-38, %v2440
          %v2442 = vsel %vm2439, %v2441, %v2437
          %v2443 = vmul.f32 %v2205, %v2442
          %v2444 = vrcp.pop %v2277
          %v2445 = vmul.f32 %v2277, %v2444
          %v2446 = vsub.f32 1.0, %v2445
          %v2447 = vmul.f32 %v2444, %v2446
          %v2448 = vadd.f32 %v2444, %v2447
          %vm2449 = vweird.f32 %v2277
          %vm2450 = vweird.f32 %v2444
          %vm2451 = vmor %vm2449, %vm2450
          %v2452 = vsel %vm2451, %v2444, %v2448
          %v2453 = vand.u32 2147483647, %v2277
          %vm2454 = vcmp.eq.f32.partialorder %v2453, 8.507059e+37
          %v2455 = vand.u32 %v2277, 2147483648
          %v2456 = vor.u32 1.1754944e-38, %v2455
          %v2457 = vsel %vm2454, %v2456, %v2452
          %v2458 = vmul.f32 %v2206, %v2457
          %v2459 = vrcp.pop %v2282
          %v2460 = vmul.f32 %v2282, %v2459
          %v2461 = vsub.f32 1.0, %v2460
          %v2462 = vmul.f32 %v2459, %v2461
          %v2463 = vadd.f32 %v2459, %v2462
          %vm2464 = vweird.f32 %v2282
          %vm2465 = vweird.f32 %v2459
          %vm2466 = vmor %vm2464, %vm2465
          %v2467 = vsel %vm2466, %v2459, %v2463
          %v2468 = vand.u32 2147483647, %v2282
          %vm2469 = vcmp.eq.f32.partialorder %v2468, 8.507059e+37
          %v2470 = vand.u32 %v2282, 2147483648
          %v2471 = vor.u32 1.1754944e-38, %v2470
          %v2472 = vsel %vm2469, %v2471, %v2467
          %v2473 = vmul.f32 %v2207, %v2472
          %v2474 = vrcp.pop %v2287
          %v2475 = vmul.f32 %v2287, %v2474
          %v2476 = vsub.f32 1.0, %v2475
          %v2477 = vmul.f32 %v2474, %v2476
          %v2478 = vadd.f32 %v2474, %v2477
          %vm2479 = vweird.f32 %v2287
          %vm2480 = vweird.f32 %v2474
          %vm2481 = vmor %vm2479, %vm2480
          %v2482 = vsel %vm2481, %v2474, %v2478
          %v2483 = vand.u32 2147483647, %v2287
          %vm2484 = vcmp.eq.f32.partialorder %v2483, 8.507059e+37
          %v2485 = vand.u32 %v2287, 2147483648
          %v2486 = vor.u32 1.1754944e-38, %v2485
          %v2487 = vsel %vm2484, %v2486, %v2482
          %v2488 = vmul.f32 %v2208, %v2487
          %v2489 = vrcp.pop %v2292
          %v2490 = vmul.f32 %v2292, %v2489
          %v2491 = vsub.f32 1.0, %v2490
          %v2492 = vmul.f32 %v2489, %v2491
          %v2493 = vadd.f32 %v2489, %v2492
          %vm2494 = vweird.f32 %v2292
          %vm2495 = vweird.f32 %v2489
          %vm2496 = vmor %vm2494, %vm2495
          %v2497 = vsel %vm2496, %v2489, %v2493
          %v2498 = vand.u32 2147483647, %v2292
          %vm2499 = vcmp.eq.f32.partialorder %v2498, 8.507059e+37
          %v2500 = vand.u32 %v2292, 2147483648
          %v2501 = vor.u32 1.1754944e-38, %v2500
          %v2502 = vsel %vm2499, %v2501, %v2497
          %v2503 = vmul.f32 %v2209, %v2502
          %v2504 = vrcp.pop %v2297
          %v2505 = vmul.f32 %v2297, %v2504
          %v2506 = vsub.f32 1.0, %v2505
          %v2507 = vmul.f32 %v2504, %v2506
          %v2508 = vadd.f32 %v2504, %v2507
          %vm2509 = vweird.f32 %v2297
          %vm2510 = vweird.f32 %v2504
          %vm2511 = vmor %vm2509, %vm2510
          %v2512 = vsel %vm2511, %v2504, %v2508
          %v2513 = vand.u32 2147483647, %v2297
          %vm2514 = vcmp.eq.f32.partialorder %v2513, 8.507059e+37
          %v2515 = vand.u32 %v2297, 2147483648
          %v2516 = vor.u32 1.1754944e-38, %v2515
          %v2517 = vsel %vm2514, %v2516, %v2512
          %v2518 = vmul.f32 %v2210, %v2517
          %v2519 = vrcp.pop %v2302
          %v2520 = vmul.f32 %v2302, %v2519
          %v2521 = vsub.f32 1.0, %v2520
          %v2522 = vmul.f32 %v2519, %v2521
          %v2523 = vadd.f32 %v2519, %v2522
          %vm2524 = vweird.f32 %v2302
          %vm2525 = vweird.f32 %v2519
          %vm2526 = vmor %vm2524, %vm2525
          %v2527 = vsel %vm2526, %v2519, %v2523
          %v2528 = vand.u32 2147483647, %v2302
          %vm2529 = vcmp.eq.f32.partialorder %v2528, 8.507059e+37
          %v2530 = vand.u32 %v2302, 2147483648
          %v2531 = vor.u32 1.1754944e-38, %v2530
          %v2532 = vsel %vm2529, %v2531, %v2527
          %v2533 = vmul.f32 %v2211, %v2532
          %v2534 = vrcp.pop %v2307
          %v2535 = vmul.f32 %v2307, %v2534
          %v2536 = vsub.f32 1.0, %v2535
          %v2537 = vmul.f32 %v2534, %v2536
          %v2538 = vadd.f32 %v2534, %v2537
          %vm2539 = vweird.f32 %v2307
          %vm2540 = vweird.f32 %v2534
          %vm2541 = vmor %vm2539, %vm2540
          %v2542 = vsel %vm2541, %v2534, %v2538
          %v2543 = vand.u32 2147483647, %v2307
          %vm2544 = vcmp.eq.f32.partialorder %v2543, 8.507059e+37
          %v2545 = vand.u32 %v2307, 2147483648
          %v2546 = vor.u32 1.1754944e-38, %v2545
          %v2547 = vsel %vm2544, %v2546, %v2542
          %v2548 = vmul.f32 %v2212, %v2547
          %v2549 = vrcp.pop %v2312
          %v2550 = vmul.f32 %v2312, %v2549
          %v2551 = vsub.f32 1.0, %v2550
          %v2552 = vmul.f32 %v2549, %v2551
          %v2553 = vadd.f32 %v2549, %v2552
          %vm2554 = vweird.f32 %v2312
          %vm2555 = vweird.f32 %v2549
          %vm2556 = vmor %vm2554, %vm2555
          %v2557 = vsel %vm2556, %v2549, %v2553
          %v2558 = vand.u32 2147483647, %v2312
          %vm2559 = vcmp.eq.f32.partialorder %v2558, 8.507059e+37
          %v2560 = vand.u32 %v2312, 2147483648
          %v2561 = vor.u32 1.1754944e-38, %v2560
          %v2562 = vsel %vm2559, %v2561, %v2557
          %v2563 = vmul.f32 %v2213, %v2562
          %v2564 = vrcp.pop %v2317
          %v2565 = vmul.f32 %v2317, %v2564
          %v2566 = vsub.f32 1.0, %v2565
          %v2567 = vmul.f32 %v2564, %v2566
          %v2568 = vadd.f32 %v2564, %v2567
          %vm2569 = vweird.f32 %v2317
          %vm2570 = vweird.f32 %v2564
          %vm2571 = vmor %vm2569, %vm2570
          %v2572 = vsel %vm2571, %v2564, %v2568
          %v2573 = vand.u32 2147483647, %v2317
          %vm2574 = vcmp.eq.f32.partialorder %v2573, 8.507059e+37
          %v2575 = vand.u32 %v2317, 2147483648
          %v2576 = vor.u32 1.1754944e-38, %v2575
          %v2577 = vsel %vm2574, %v2576, %v2572
          %v2578 = vmul.f32 %v2214, %v2577
          %v2579 = vrcp.pop %v2322
          %v2580 = vmul.f32 %v2322, %v2579
          %v2581 = vsub.f32 1.0, %v2580
          %v2582 = vmul.f32 %v2579, %v2581
          %v2583 = vadd.f32 %v2579, %v2582
          %vm2584 = vweird.f32 %v2322
          %vm2585 = vweird.f32 %v2579
          %vm2586 = vmor %vm2584, %vm2585
          %v2587 = vsel %vm2586, %v2579, %v2583
          %v2588 = vand.u32 2147483647, %v2322
          %vm2589 = vcmp.eq.f32.partialorder %v2588, 8.507059e+37
          %v2590 = vand.u32 %v2322, 2147483648
          %v2591 = vor.u32 1.1754944e-38, %v2590
          %v2592 = vsel %vm2589, %v2591, %v2587
          %v2593 = vmul.f32 %v2215, %v2592
          %v2594 = vrcp.pop %v2327
          %v2595 = vmul.f32 %v2327, %v2594
          %v2596 = vsub.f32 1.0, %v2595
          %v2597 = vmul.f32 %v2594, %v2596
          %v2598 = vadd.f32 %v2594, %v2597
          %vm2599 = vweird.f32 %v2327
          %vm2600 = vweird.f32 %v2594
          %vm2601 = vmor %vm2599, %vm2600
          %v2602 = vsel %vm2601, %v2594, %v2598
          %v2603 = vand.u32 2147483647, %v2327
          %vm2604 = vcmp.eq.f32.partialorder %v2603, 8.507059e+37
          %v2605 = vand.u32 %v2327, 2147483648
          %v2606 = vor.u32 1.1754944e-38, %v2605
          %v2607 = vsel %vm2604, %v2606, %v2602
          %v2608 = vmul.f32 %v2216, %v2607
          %v2609 = vrcp.pop %v2332
          %v2610 = vmul.f32 %v2332, %v2609
          %v2611 = vsub.f32 1.0, %v2610
          %v2612 = vmul.f32 %v2609, %v2611
          %v2613 = vadd.f32 %v2609, %v2612
          %vm2614 = vweird.f32 %v2332
          %vm2615 = vweird.f32 %v2609
          %vm2616 = vmor %vm2614, %vm2615
          %v2617 = vsel %vm2616, %v2609, %v2613
          %v2618 = vand.u32 2147483647, %v2332
          %vm2619 = vcmp.eq.f32.partialorder %v2618, 8.507059e+37
          %v2620 = vand.u32 %v2332, 2147483648
          %v2621 = vor.u32 1.1754944e-38, %v2620
          %v2622 = vsel %vm2619, %v2621, %v2617
          %v2623 = vmul.f32 %v2217, %v2622
          %v2624 = vrcp.pop %v2337
          %v2625 = vmul.f32 %v2337, %v2624
          %v2626 = vsub.f32 1.0, %v2625
          %v2627 = vmul.f32 %v2624, %v2626
          %v2628 = vadd.f32 %v2624, %v2627
          %vm2629 = vweird.f32 %v2337
          %vm2630 = vweird.f32 %v2624
          %vm2631 = vmor %vm2629, %vm2630
          %v2632 = vsel %vm2631, %v2624, %v2628
          %v2633 = vand.u32 2147483647, %v2337
          %vm2634 = vcmp.eq.f32.partialorder %v2633, 8.507059e+37
          %v2635 = vand.u32 %v2337, 2147483648
          %v2636 = vor.u32 1.1754944e-38, %v2635
          %v2637 = vsel %vm2634, %v2636, %v2632
          %v2638 = vmul.f32 %v2218, %v2637
          %v2639 = vrcp.pop %v2342
          %v2640 = vmul.f32 %v2342, %v2639
          %v2641 = vsub.f32 1.0, %v2640
          %v2642 = vmul.f32 %v2639, %v2641
          %v2643 = vadd.f32 %v2639, %v2642
          %vm2644 = vweird.f32 %v2342
          %vm2645 = vweird.f32 %v2639
          %vm2646 = vmor %vm2644, %vm2645
          %v2647 = vsel %vm2646, %v2639, %v2643
          %v2648 = vand.u32 2147483647, %v2342
          %vm2649 = vcmp.eq.f32.partialorder %v2648, 8.507059e+37
          %v2650 = vand.u32 %v2342, 2147483648
          %v2651 = vor.u32 1.1754944e-38, %v2650
          %v2652 = vsel %vm2649, %v2651, %v2647
          %v2653 = vmul.f32 %v2219, %v2652
          %v2654 = vrcp.pop %v2347
          %v2655 = vmul.f32 %v2347, %v2654
          %v2656 = vsub.f32 1.0, %v2655
          %v2657 = vmul.f32 %v2654, %v2656
          %v2658 = vadd.f32 %v2654, %v2657
          %vm2659 = vweird.f32 %v2347
          %vm2660 = vweird.f32 %v2654
          %vm2661 = vmor %vm2659, %vm2660
          %v2662 = vsel %vm2661, %v2654, %v2658
          %v2663 = vand.u32 2147483647, %v2347
          %vm2664 = vcmp.eq.f32.partialorder %v2663, 8.507059e+37
          %v2665 = vand.u32 %v2347, 2147483648
          %v2666 = vor.u32 1.1754944e-38, %v2665
          %v2667 = vsel %vm2664, %v2666, %v2662
          %v2668 = vmul.f32 %v2220, %v2667
          %v2669 = vrcp.pop %v2352
          %v2670 = vmul.f32 %v2352, %v2669
          %v2671 = vsub.f32 1.0, %v2670
          %v2672 = vmul.f32 %v2669, %v2671
          %v2673 = vadd.f32 %v2669, %v2672
          %vm2674 = vweird.f32 %v2352
          %vm2675 = vweird.f32 %v2669
          %vm2676 = vmor %vm2674, %vm2675
          %v2677 = vsel %vm2676, %v2669, %v2673
          %v2678 = vand.u32 2147483647, %v2352
          %vm2679 = vcmp.eq.f32.partialorder %v2678, 8.507059e+37
          %v2680 = vand.u32 %v2352, 2147483648
          %v2681 = vor.u32 1.1754944e-38, %v2680
          %v2682 = vsel %vm2679, %v2681, %v2677
          %v2683 = vmul.f32 %v2221, %v2682
          %v2684 = vrcp.pop %v2357
          %v2685 = vmul.f32 %v2357, %v2684
          %v2686 = vsub.f32 1.0, %v2685
          %v2687 = vmul.f32 %v2684, %v2686
          %v2688 = vadd.f32 %v2684, %v2687
          %vm2689 = vweird.f32 %v2357
          %vm2690 = vweird.f32 %v2684
          %vm2691 = vmor %vm2689, %vm2690
          %v2692 = vsel %vm2691, %v2684, %v2688
          %v2693 = vand.u32 2147483647, %v2357
          %vm2694 = vcmp.eq.f32.partialorder %v2693, 8.507059e+37
          %v2695 = vand.u32 %v2357, 2147483648
          %v2696 = vor.u32 1.1754944e-38, %v2695
          %v2697 = vsel %vm2694, %v2696, %v2692
          %v2698 = vmul.f32 %v2222, %v2697
          %v2699 = vrcp.pop %v2362
          %v2700 = vmul.f32 %v2362, %v2699
          %v2701 = vsub.f32 1.0, %v2700
          %v2702 = vmul.f32 %v2699, %v2701
          %v2703 = vadd.f32 %v2699, %v2702
          %vm2704 = vweird.f32 %v2362
          %vm2705 = vweird.f32 %v2699
          %vm2706 = vmor %vm2704, %vm2705
          %v2707 = vsel %vm2706, %v2699, %v2703
          %v2708 = vand.u32 2147483647, %v2362
          %vm2709 = vcmp.eq.f32.partialorder %v2708, 8.507059e+37
          %v2710 = vand.u32 %v2362, 2147483648
          %v2711 = vor.u32 1.1754944e-38, %v2710
          %v2712 = vsel %vm2709, %v2711, %v2707
          %v2713 = vmul.f32 %v2223, %v2712
          %v2714 = vrcp.pop %v2367
          %v2715 = vmul.f32 %v2367, %v2714
          %v2716 = vsub.f32 1.0, %v2715
          %v2717 = vmul.f32 %v2714, %v2716
          %v2718 = vadd.f32 %v2714, %v2717
          %vm2719 = vweird.f32 %v2367
          %vm2720 = vweird.f32 %v2714
          %vm2721 = vmor %vm2719, %vm2720
          %v2722 = vsel %vm2721, %v2714, %v2718
          %v2723 = vand.u32 2147483647, %v2367
          %vm2724 = vcmp.eq.f32.partialorder %v2723, 8.507059e+37
          %v2725 = vand.u32 %v2367, 2147483648
          %v2726 = vor.u32 1.1754944e-38, %v2725
          %v2727 = vsel %vm2724, %v2726, %v2722
          %v2728 = vmul.f32 %v2224, %v2727
          %v2729 = vrcp.pop %v2372
          %v2730 = vmul.f32 %v2372, %v2729
          %v2731 = vsub.f32 1.0, %v2730
          %v2732 = vmul.f32 %v2729, %v2731
          %v2733 = vadd.f32 %v2729, %v2732
          %vm2734 = vweird.f32 %v2372
          %vm2735 = vweird.f32 %v2729
          %vm2736 = vmor %vm2734, %vm2735
          %v2737 = vsel %vm2736, %v2729, %v2733
          %v2738 = vand.u32 2147483647, %v2372
          %vm2739 = vcmp.eq.f32.partialorder %v2738, 8.507059e+37
          %v2740 = vand.u32 %v2372, 2147483648
          %v2741 = vor.u32 1.1754944e-38, %v2740
          %v2742 = vsel %vm2739, %v2741, %v2737
          %v2743 = vmul.f32 %v2225, %v2742
          %v2744 = vrcp.pop %v2377
          %v2745 = vmul.f32 %v2377, %v2744
          %v2746 = vsub.f32 1.0, %v2745
          %v2747 = vmul.f32 %v2744, %v2746
          %v2748 = vadd.f32 %v2744, %v2747
          %vm2749 = vweird.f32 %v2377
          %vm2750 = vweird.f32 %v2744
          %vm2751 = vmor %vm2749, %vm2750
          %v2752 = vsel %vm2751, %v2744, %v2748
          %v2753 = vand.u32 2147483647, %v2377
          %vm2754 = vcmp.eq.f32.partialorder %v2753, 8.507059e+37
          %v2755 = vand.u32 %v2377, 2147483648
          %v2756 = vor.u32 1.1754944e-38, %v2755
          %v2757 = vsel %vm2754, %v2756, %v2752
          %v2758 = vmul.f32 %v2226, %v2757
          %v2759 = vrcp.pop %v2382
          %v2760 = vmul.f32 %v2382, %v2759
          %v2761 = vsub.f32 1.0, %v2760
          %v2762 = vmul.f32 %v2759, %v2761
          %v2763 = vadd.f32 %v2759, %v2762
          %vm2764 = vweird.f32 %v2382
          %vm2765 = vweird.f32 %v2759
          %vm2766 = vmor %vm2764, %vm2765
          %v2767 = vsel %vm2766, %v2759, %v2763
          %v2768 = vand.u32 2147483647, %v2382
          %vm2769 = vcmp.eq.f32.partialorder %v2768, 8.507059e+37
          %v2770 = vand.u32 %v2382, 2147483648
          %v2771 = vor.u32 1.1754944e-38, %v2770
          %v2772 = vsel %vm2769, %v2771, %v2767
          %v2773 = vmul.f32 %v2227, %v2772
          %v2774 = vrcp.pop %v2387
          %v2775 = vmul.f32 %v2387, %v2774
          %v2776 = vsub.f32 1.0, %v2775
          %v2777 = vmul.f32 %v2774, %v2776
          %v2778 = vadd.f32 %v2774, %v2777
          %vm2779 = vweird.f32 %v2387
          %vm2780 = vweird.f32 %v2774
          %vm2781 = vmor %vm2779, %vm2780
          %v2782 = vsel %vm2781, %v2774, %v2778
          %v2783 = vand.u32 2147483647, %v2387
          %vm2784 = vcmp.eq.f32.partialorder %v2783, 8.507059e+37
          %v2785 = vand.u32 %v2387, 2147483648
          %v2786 = vor.u32 1.1754944e-38, %v2785
          %v2787 = vsel %vm2784, %v2786, %v2782
          %v2788 = vmul.f32 %v2228, %v2787
          %v2789 = vrcp.pop %v2392
          %v2790 = vmul.f32 %v2392, %v2789
          %v2791 = vsub.f32 1.0, %v2790
          %v2792 = vmul.f32 %v2789, %v2791
          %v2793 = vadd.f32 %v2789, %v2792
          %vm2794 = vweird.f32 %v2392
          %vm2795 = vweird.f32 %v2789
          %vm2796 = vmor %vm2794, %vm2795
          %v2797 = vsel %vm2796, %v2789, %v2793
          %v2798 = vand.u32 2147483647, %v2392
          %vm2799 = vcmp.eq.f32.partialorder %v2798, 8.507059e+37
          %v2800 = vand.u32 %v2392, 2147483648
          %v2801 = vor.u32 1.1754944e-38, %v2800
          %v2802 = vsel %vm2799, %v2801, %v2797
          %v2803 = vmul.f32 %v2229, %v2802
          %v2804 = vrcp.pop %v2397
          %v2805 = vmul.f32 %v2397, %v2804
          %v2806 = vsub.f32 1.0, %v2805
          %v2807 = vmul.f32 %v2804, %v2806
          %v2808 = vadd.f32 %v2804, %v2807
          %vm2809 = vweird.f32 %v2397
          %vm2810 = vweird.f32 %v2804
          %vm2811 = vmor %vm2809, %vm2810
          %v2812 = vsel %vm2811, %v2804, %v2808
          %v2813 = vand.u32 2147483647, %v2397
          %vm2814 = vcmp.eq.f32.partialorder %v2813, 8.507059e+37
          %v2815 = vand.u32 %v2397, 2147483648
          %v2816 = vor.u32 1.1754944e-38, %v2815
          %v2817 = vsel %vm2814, %v2816, %v2812
          %v2818 = vmul.f32 %v2230, %v2817
          %v2819 = vrcp.pop %v2402
          %v2820 = vmul.f32 %v2402, %v2819
          %v2821 = vsub.f32 1.0, %v2820
          %v2822 = vmul.f32 %v2819, %v2821
          %v2823 = vadd.f32 %v2819, %v2822
          %vm2824 = vweird.f32 %v2402
          %vm2825 = vweird.f32 %v2819
          %vm2826 = vmor %vm2824, %vm2825
          %v2827 = vsel %vm2826, %v2819, %v2823
          %v2828 = vand.u32 2147483647, %v2402
          %vm2829 = vcmp.eq.f32.partialorder %v2828, 8.507059e+37
          %v2830 = vand.u32 %v2402, 2147483648
          %v2831 = vor.u32 1.1754944e-38, %v2830
          %v2832 = vsel %vm2829, %v2831, %v2827
          %v2833 = vmul.f32 %v2231, %v2832
          %v2834 = vrcp.pop %v2407
          %v2835 = vmul.f32 %v2407, %v2834
          %v2836 = vsub.f32 1.0, %v2835
          %v2837 = vmul.f32 %v2834, %v2836
          %v2838 = vadd.f32 %v2834, %v2837
          %vm2839 = vweird.f32 %v2407
          %vm2840 = vweird.f32 %v2834
          %vm2841 = vmor %vm2839, %vm2840
          %v2842 = vsel %vm2841, %v2834, %v2838
          %v2843 = vand.u32 2147483647, %v2407
          %vm2844 = vcmp.eq.f32.partialorder %v2843, 8.507059e+37
          %v2845 = vand.u32 %v2407, 2147483648
          %v2846 = vor.u32 1.1754944e-38, %v2845
          %v2847 = vsel %vm2844, %v2846, %v2842
          %v2848 = vmul.f32 %v2232, %v2847
          %v2849 = vrcp.pop %v2412
          %v2850 = vmul.f32 %v2412, %v2849
          %v2851 = vsub.f32 1.0, %v2850
          %v2852 = vmul.f32 %v2849, %v2851
          %v2853 = vadd.f32 %v2849, %v2852
          %vm2854 = vweird.f32 %v2412
          %vm2855 = vweird.f32 %v2849
          %vm2856 = vmor %vm2854, %vm2855
          %v2857 = vsel %vm2856, %v2849, %v2853
          %v2858 = vand.u32 2147483647, %v2412
          %vm2859 = vcmp.eq.f32.partialorder %v2858, 8.507059e+37
          %v2860 = vand.u32 %v2412, 2147483648
          %v2861 = vor.u32 1.1754944e-38, %v2860
          %v2862 = vsel %vm2859, %v2861, %v2857
          %v2863 = vmul.f32 %v2233, %v2862
          %v2864 = vrcp.pop %v2417
          %v2865 = vmul.f32 %v2417, %v2864
          %v2866 = vsub.f32 1.0, %v2865
          %v2867 = vmul.f32 %v2864, %v2866
          %v2868 = vadd.f32 %v2864, %v2867
          %vm2869 = vweird.f32 %v2417
          %vm2870 = vweird.f32 %v2864
          %vm2871 = vmor %vm2869, %vm2870
          %v2872 = vsel %vm2871, %v2864, %v2868
          %v2873 = vand.u32 2147483647, %v2417
          %vm2874 = vcmp.eq.f32.partialorder %v2873, 8.507059e+37
          %v2875 = vand.u32 %v2417, 2147483648
          %v2876 = vor.u32 1.1754944e-38, %v2875
          %v2877 = vsel %vm2874, %v2876, %v2872
          %v2878 = vmul.f32 %v2234, %v2877
          %v2879 = vrcp.pop %v2422
          %v2880 = vmul.f32 %v2422, %v2879
          %v2881 = vsub.f32 1.0, %v2880
          %v2882 = vmul.f32 %v2879, %v2881
          %v2883 = vadd.f32 %v2879, %v2882
          %vm2884 = vweird.f32 %v2422
          %vm2885 = vweird.f32 %v2879
          %vm2886 = vmor %vm2884, %vm2885
          %v2887 = vsel %vm2886, %v2879, %v2883
          %v2888 = vand.u32 2147483647, %v2422
          %vm2889 = vcmp.eq.f32.partialorder %v2888, 8.507059e+37
          %v2890 = vand.u32 %v2422, 2147483648
          %v2891 = vor.u32 1.1754944e-38, %v2890
          %v2892 = vsel %vm2889, %v2891, %v2887
          %v2893 = vmul.f32 %v2235, %v2892
          %v2894 = vrcp.pop %v2427
          %v2895 = vmul.f32 %v2427, %v2894
          %v2896 = vsub.f32 1.0, %v2895
          %v2897 = vmul.f32 %v2894, %v2896
          %v2898 = vadd.f32 %v2894, %v2897
          %vm2899 = vweird.f32 %v2427
          %vm2900 = vweird.f32 %v2894
          %vm2901 = vmor %vm2899, %vm2900
          %v2902 = vsel %vm2901, %v2894, %v2898
          %v2903 = vand.u32 2147483647, %v2427
          %vm2904 = vcmp.eq.f32.partialorder %v2903, 8.507059e+37
          %v2905 = vand.u32 %v2427, 2147483648
          %v2906 = vor.u32 1.1754944e-38, %v2905
          %v2907 = vsel %vm2904, %v2906, %v2902
          %v2908 = vmul.f32 %v2236, %v2907
          %2909 = vxpose.xlu0.b32.start [1/16] %v2443, 128
          %2910 = vxpose.xlu0.b32.cont [2/16] %v2458, 128
          %2911 = vxpose.xlu0.b32.cont [3/16] %v2473, 128
          %2912 = vxpose.xlu0.b32.cont [4/16] %v2488, 128
          %2913 = vxpose.xlu0.b32.cont [5/16] %v2503, 128
          %2914 = vxpose.xlu0.b32.cont [6/16] %v2518, 128
          %2915 = vxpose.xlu0.b32.cont [7/16] %v2533, 128
          %2916 = vxpose.xlu0.b32.cont [8/16] %v2548, 128
          %2917 = vxpose.xlu0.b32.cont [9/16] %v2563, 128
          %2918 = vxpose.xlu0.b32.cont [10/16] %v2578, 128
          %2919 = vxpose.xlu0.b32.cont [11/16] %v2593, 128
          %2920 = vxpose.xlu0.b32.cont [12/16] %v2608, 128
          %2921 = vxpose.xlu0.b32.cont [13/16] %v2623, 128
          %2922 = vxpose.xlu0.b32.cont [14/16] %v2638, 128
          %2923 = vxpose.xlu0.b32.cont [15/16] %v2653, 128
          %2924 = vxpose.xlu0.b32.end [16/16] %v2668, 128
          %v2925 = vpop.trf.xlu0
          %v2926 = vpop.trf.xlu0
          %v2927 = vpop.trf.xlu0
          %v2928 = vpop.trf.xlu0
          %v2929 = vpop.trf.xlu0
          %v2930 = vpop.trf.xlu0
          %v2931 = vpop.trf.xlu0
          %v2932 = vpop.trf.xlu0
          %v2933 = vpop.trf.xlu0
          %v2934 = vpop.trf.xlu0
          %v2935 = vpop.trf.xlu0
          %v2936 = vpop.trf.xlu0
          %v2937 = vpop.trf.xlu0
          %v2938 = vpop.trf.xlu0
          %v2939 = vpop.trf.xlu0
          %v2940 = vpop.trf.xlu0
          %2941 = vxpose.xlu0.b32.start [1/16] %v2683, 128
          %2942 = vxpose.xlu0.b32.cont [2/16] %v2698, 128
          %2943 = vxpose.xlu0.b32.cont [3/16] %v2713, 128
          %2944 = vxpose.xlu0.b32.cont [4/16] %v2728, 128
          %2945 = vxpose.xlu0.b32.cont [5/16] %v2743, 128
          %2946 = vxpose.xlu0.b32.cont [6/16] %v2758, 128
          %2947 = vxpose.xlu0.b32.cont [7/16] %v2773, 128
          %2948 = vxpose.xlu0.b32.cont [8/16] %v2788, 128
          %2949 = vxpose.xlu0.b32.cont [9/16] %v2803, 128
          %2950 = vxpose.xlu0.b32.cont [10/16] %v2818, 128
          %2951 = vxpose.xlu0.b32.cont [11/16] %v2833, 128
          %2952 = vxpose.xlu0.b32.cont [12/16] %v2848, 128
          %2953 = vxpose.xlu0.b32.cont [13/16] %v2863, 128
          %2954 = vxpose.xlu0.b32.cont [14/16] %v2878, 128
          %2955 = vxpose.xlu0.b32.cont [15/16] %v2893, 128
          %2956 = vxpose.xlu0.b32.end [16/16] %v2908, 128
          %v2957 = vpop.trf.xlu0
          %v2958 = vpop.trf.xlu0
          %v2959 = vpop.trf.xlu0
          %v2960 = vpop.trf.xlu0
          %v2961 = vpop.trf.xlu0
          %v2962 = vpop.trf.xlu0
          %v2963 = vpop.trf.xlu0
          %v2964 = vpop.trf.xlu0
          %v2965 = vpop.trf.xlu0
          %v2966 = vpop.trf.xlu0
          %v2967 = vpop.trf.xlu0
          %v2968 = vpop.trf.xlu0
          %v2969 = vpop.trf.xlu0
          %v2970 = vpop.trf.xlu0
          %v2971 = vpop.trf.xlu0
          %v2972 = vpop.trf.xlu0
          %v2973 = vld [vmem:[%s339] sm:$0xff]
          %v2974 = vld [vmem:[%s339 + $0x8] sm:$0xff]
          %v2975 = vld [vmem:[%s339 + $0x10] sm:$0xff]
          %v2976 = vld [vmem:[%s339 + $0x18] sm:$0xff]
          %v2977 = vld [vmem:[%s339 + $0x20] sm:$0xff]
          %v2978 = vld [vmem:[%s339 + $0x28] sm:$0xff]
          %v2979 = vld [vmem:[%s339 + $0x30] sm:$0xff]
          %v2980 = vld [vmem:[%s339 + $0x38] sm:$0xff]
          %v2981 = vadd.f32 %v2925, %v2973
          %v2982 = vadd.f32 %v2957, %v2974
          %v2983 = vadd.f32 %v2926, %v2975
          %v2984 = vadd.f32 %v2958, %v2976
          %v2985 = vadd.f32 %v2927, %v2977
          %v2986 = vadd.f32 %v2959, %v2978
          %v2987 = vadd.f32 %v2928, %v2979
          %v2988 = vadd.f32 %v2960, %v2980
          %2989 = vst [vmem:[%s300] sm:$0xff] %v2981
          %2990 = vst [vmem:[%s300 + $0x8] sm:$0xff] %v2982
          %2991 = vst [vmem:[%s300 + $0x10] sm:$0xff] %v2983
          %2992 = vst [vmem:[%s300 + $0x18] sm:$0xff] %v2984
          %2993 = vst [vmem:[%s300 + $0x20] sm:$0xff] %v2985
          %2994 = vst [vmem:[%s300 + $0x28] sm:$0xff] %v2986
          %2995 = vst [vmem:[%s300 + $0x30] sm:$0xff] %v2987
          %2996 = vst [vmem:[%s300 + $0x38] sm:$0xff] %v2988
        $region44: #{tpu_custom_call.1} parent=35 // pred_fallthru
          _
        %s2997 = sand.u32 %s159, 1
        %s2998 = scalar_lea.sflag [#allocation6], %s2997
        %s2999 = sand.u32 %s159, 1
        %s3000 = smul.addr %s2999, 64
        %s3001 = scalar_lea.vmem [#allocation5], %s3000
        // Predicated region
        $region45: #{tpu_custom_call.1} parent=35 // pred_check
          %p3002 = pneg %p169
        $region46: #{tpu_custom_call.1} parent=35 // pred_check_branch
          %3004 = sbr.rel (%p3002) target = $region48
        $region47: #{tpu_custom_call.1} parent=35 // pred_region
          %s3005 = smul.u32 2, %s24
          %3007 = vsyncadd %s2998, 0
          %s3008 = smul.addr %s23, 8
          %s3009 = sadd.s32 %s3005, %s3008
          %s3010 = smul.addr %s3009, 8
          %s3011 = scalar_lea.hbm %s4, %s3010
          %s3012 = sshll.u32 %s3001, 4
          %s3013 = int_to_ptr.vmem [resolvable:$true] %s3012
          %s3014 = sshll.u32 %s3011, 4
          %s3015 = int_to_ptr.hbm [resolvable:$true] %s3014
          %3020 = dma.vmem_to_hbm [thread:$0]  %s3013, 1024, %s3015, %s2998, 256, 256, 16
        $region48: #{tpu_custom_call.1} parent=35 // pred_fallthru
          _
      $region36: #{tpu_custom_call.1} parent=5 // pred_fallthru
        _
      %p3021 = scmp.le.s32.totalorder 2, %s13
      // Predicated region
      $region49: #{tpu_custom_call.1} parent=5 // pred_check
        %p3022 = pneg %p3021
      $region50: #{tpu_custom_call.1} parent=5 // pred_check_branch
        %3024 = sbr.rel (%p3022) target = $region52
      $region51: #{tpu_custom_call.1} parent=5 // pred_region
        %s3025 = ssub.s32 %s13, 2
        // Predicated region
        $region53: #{tpu_custom_call.1} parent=51 // pred_check
          %p3026 = pneg %p175
        $region54: #{tpu_custom_call.1} parent=51 // pred_check_branch
          %3028 = sbr.rel (%p3026) target = $region56
        $region55: #{tpu_custom_call.1} parent=51 // pred_region
          %s3029 = sand.u32 %s160, 1
          %s3030 = scalar_lea.sflag [#allocation6], %s3029
          %s3031 = sand.u32 %s160, 1
          %s3032 = smul.addr %s3031, 64
          %s3033 = scalar_lea.vmem [#allocation5], %s3032
          %3035 = dma.done %s3030, 1024
        $region56: #{tpu_custom_call.1} parent=51 // pred_fallthru
          _
      $region52: #{tpu_custom_call.1} parent=5 // pred_fallthru
        _
    $region6: #{tpu_custom_call.1} parent=1 // loop_footer
      %s17 = sadd.s32 1, %s13
    $region7: #{tpu_custom_call.1} parent=1 // loop_footer_branch
      %12 = sbr.rel target = $region3
    $region8: #{tpu_custom_call.1} parent=1 // loop_exit
      _
    %3036 = vsyncpa [#allocation6], 1
    %s3037 = scalar_lea.sflag [#allocation6], 1
    %3038 = vsyncpa %s3037, 1

</llo_original>
